<compile_context>
chip_gen: v6e
topology: v6e:2x2x1
jax: 0.10.0
libtpu: 0.0.40
codegen_flags: <defaults>
</compile_context>

<pallas_src>
import functools

import numpy as np
import jax
import jax.numpy as jnp
from jax.experimental import pallas as pl
from jax.experimental.pallas import tpu as pltpu

K = 3  # conv / pool kernel size


def _forward_one_image(xi, w1, b1, w2, b2, sel, fw1, fb1, fw2, fb2, *, win):
    """Forward for ONE image; activations are (channels, flat_spatial) with the
    large flattened-spatial axis on the 128 lanes (row stride = `win`)."""
    cin = xi.shape[0]
    o1, o2 = w1.shape[0], w2.shape[0]
    h1 = win - K + 1            # conv1 output rows (14)
    h2 = h1 - K + 1             # conv2 output rows (12)
    l1 = h1 * win               # conv1 flat columns (224); cols win-2..win-1
    l2 = h2 * win               # conv2 flat columns (192);   of each row unused

    f32, bf16 = jnp.float32, jnp.bfloat16

    # ---- conv1 + ReLU: im2col (rows ordered (ki,kj,c)) + ONE bf16 MXU dot ----
    xp = jnp.concatenate([xi, jnp.zeros((cin, win), xi.dtype)], axis=1)
    im1 = jnp.concatenate(
        [xp[:, ki * win + kj: ki * win + kj + l1]
         for ki in range(K) for kj in range(K)], axis=0)              # (9*cin, l1)
    a1 = jnp.dot(w1, im1.astype(bf16), preferred_element_type=f32)     # (o1, l1)
    a1 = jnp.maximum(a1 + b1, 0.0)

    # ---- conv2 (ReLU only after the pool, matching the PyTorch Sequential) ---
    a1p = jnp.concatenate([a1, jnp.zeros((o1, win), a1.dtype)], axis=1)
    im2 = jnp.concatenate(
        [a1p[:, ki * win + kj: ki * win + kj + l2]
         for ki in range(K) for kj in range(K)], axis=0)              # (9*o1, l2)
    a2 = jnp.dot(w2, im2.astype(bf16), preferred_element_type=f32) + b2  # (o2, l2)

    # ---- MaxPool2d(3, stride=2) + ReLU, fully vectorized ---------------------
    rm = jnp.maximum(jnp.maximum(a2[:, :l2 - 2 * win], a2[:, win:l2 - win]),
                     a2[:, 2 * win:])                                  # row-window max
    cw = l2 - 2 * win - 2
    cm = jnp.maximum(jnp.maximum(rm[:, :cw], rm[:, 1:cw + 1]), rm[:, 2:cw + 2])
    pm = jnp.maximum(cm, 0.0)                                          # (o2, cw)
    # stride-2 anchor pick as a one-hot matmul on the (idle) MXU: sel (cw, P*P)
    pooled = jnp.dot(pm.astype(bf16), sel, preferred_element_type=f32)  # (o2, P*P)

    # ---- flatten to PyTorch (c, oy, ox) order: lane concat of channel rows ---
    feat = jnp.concatenate([pooled[c:c + 1, :] for c in range(o2)], axis=1)

    # ---- fc1 + ReLU ; fc2 ----------------------------------------------------
    hf = jnp.maximum(
        jnp.dot(feat.astype(bf16), fw1, preferred_element_type=f32) + fb1, 0.0)
    return jnp.dot(hf.astype(bf16), fw2, preferred_element_type=f32) + fb2


def naive_cnn_kernel(x_ref, w1_ref, b1_ref, w2_ref, b2_ref, sel_ref,
                     fc1w_ref, fc1b_ref, fc2w_ref, fc2b_ref, out_ref, *, win):
    # Parameters are loaded from their refs exactly once and stay resident.
    w1, b1 = w1_ref[...], b1_ref[...]
    w2, b2 = w2_ref[...], b2_ref[...]
    sel = sel_ref[...]
    fw1, fb1 = fc1w_ref[...], fc1b_ref[...]
    fw2, fb2 = fc2w_ref[...], fc2b_ref[...]

    bt = x_ref.shape[0]
    for i in range(bt):  # static unroll; batch_tile is small (default 1)
        out = _forward_one_image(x_ref[i], w1, b1, w2, b2, sel,
                                 fw1, fb1, fw2, fb2, win=win)
        out_ref[i] = out.astype(out_ref.dtype)


def convert_params(params, input_size):
    """One-time PyTorch-layout -> kernel-layout conversion (bf16 weights,
    im2col column order, pooling selection matrix).  Kept OUT of the jitted
    forward so nothing here re-runs per call."""
    (w1, b1, w2, b2, fw1, fb1, fw2, fb2) = params
    o1, cin = w1.shape[0], w1.shape[1]
    o2 = w2.shape[0]
    f1 = fw1.shape[0]
    fout = fw2.shape[0]
    win = input_size
    h2 = win - 2 * (K - 1)             # conv2 output rows (12)
    p = (h2 - K) // 2 + 1              # pool output rows (5)
    cw = h2 * win - 2 * win - 2        # lane width of the in-kernel 3x3-max array

    # OIHW -> (o, ki, kj, c): columns match the kernel's im2col row order.
    w1_m = jnp.transpose(w1, (0, 2, 3, 1)).reshape(o1, K * K * cin).astype(jnp.bfloat16)
    w2_m = jnp.transpose(w2, (0, 2, 3, 1)).reshape(o2, K * K * o1).astype(jnp.bfloat16)

    # One-hot matrix picking stride-2 pool anchors (2*oy, 2*ox) out of the
    # flattened (row stride = win) 3x3-window-max array.
    sel = np.zeros((cw, p * p), np.float32)
    for oy in range(p):
        for ox in range(p):
            sel[2 * oy * win + 2 * ox, oy * p + ox] = 1.0
    sel = jnp.asarray(sel, jnp.bfloat16)

    return (w1_m, b1.reshape(o1, 1),
            w2_m, b2.reshape(o2, 1),
            sel,
            fw1.T.astype(jnp.bfloat16), fb1.reshape(1, f1),
            fw2.T.astype(jnp.bfloat16), fb2.reshape(1, fout))


@functools.partial(jax.jit, static_argnames=("batch_tile",))
def naive_cnn_forward(x_nchw, kparams, batch_tile=1):
    """kparams must come from convert_params(); the wrapper keeps only a free
    row-major reshape (no transpose, no data movement)."""
    (w1_m, b1, w2_m, b2, sel, fw1_m, fb1, fw2_m, fb2) = kparams
    B, C, H, W = x_nchw.shape
    assert H == W, "NaiveCNN assumes square inputs"
    assert B % batch_tile == 0, "batch_tile must divide the batch"
    assert sel.shape[0] == (W - 2 * (K - 1)) * W - 2 * W - 2, \
        "convert_params() was built for a different input_size"
    fout = fw2_m.shape[1]
    bt = batch_tile

    x_flat = x_nchw.reshape(B, C, H * W)   # free NCHW view; no transpose op

    def const_spec(a):  # full-array parameter block, same at every grid step
        nd = a.ndim
        return pl.BlockSpec(a.shape, lambda b, _nd=nd: (0,) * _nd)

    # Output kept 3D (B, 1, fout) so the blocked batch axis is a leading dim
    # and the block's last two dims equal the full array dims for any bt.
    out3 = pl.pallas_call(
        functools.partial(naive_cnn_kernel, win=W),
        out_shape=jax.ShapeDtypeStruct((B, 1, fout), jnp.float32),
        grid=(B // bt,),
        in_specs=[pl.BlockSpec((bt, C, H * W), lambda b: (b, 0, 0)),
                  const_spec(w1_m), const_spec(b1),
                  const_spec(w2_m), const_spec(b2),
                  const_spec(sel),
                  const_spec(fw1_m), const_spec(fb1),
                  const_spec(fw2_m), const_spec(fb2)],
        out_specs=pl.BlockSpec((bt, 1, fout), lambda b: (b, 0, 0)),
        compiler_params=pltpu.CompilerParams(
            dimension_semantics=("parallel",)),
    )(x_flat, w1_m, b1, w2_m, b2, sel, fw1_m, fb1, fw2_m, fb2)
    return out3.reshape(B, fout)


def init_params(key, in_channels):
    """Deterministic init, PyTorch default-like uniform(-1/sqrt(fan_in), ...)."""
    ks = jax.random.split(key, 8)

    def u(k, shape, fan_in):
        bound = 1.0 / np.sqrt(fan_in)
        return jax.random.uniform(k, shape, jnp.float32, -bound, bound)

    w1 = u(ks[0], (10, in_channels, K, K), in_channels * K * K)
    b1 = u(ks[1], (10,), in_channels * K * K)
    w2 = u(ks[2], (20, 10, K, K), 10 * K * K)
    b2 = u(ks[3], (20,), 10 * K * K)
    fw1 = u(ks[4], (50, 500), 500)          # fc_input_size = 5*5*20 = 500
    fb1 = u(ks[5], (50,), 500)
    fw2 = u(ks[6], (10, 50), 50)
    fb2 = u(ks[7], (10,), 50)
    return (w1, b1, w2, b2, fw1, fb1, fw2, fb2)


def reference_forward(x_nchw, params):
    """Pure-JAX reference matching the PyTorch forward (for validation)."""
    (w1, b1, w2, b2, fw1, fb1, fw2, fb2) = params
    dn = ("NCHW", "OIHW", "NCHW")
    y = jax.lax.conv_general_dilated(x_nchw, w1, (1, 1), "VALID",
                                     dimension_numbers=dn)
    y = jnp.maximum(y + b1[None, :, None, None], 0.0)
    y = jax.lax.conv_general_dilated(y, w2, (1, 1), "VALID",
                                     dimension_numbers=dn)
    y = y + b2[None, :, None, None]
    y = jax.lax.reduce_window(y, jnp.array(-jnp.inf, y.dtype), jax.lax.max,
                              (1, 1, K, K), (1, 1, 2, 2), "VALID")
    y = jnp.maximum(y, 0.0)
    y = y.reshape(y.shape[0], -1)
    y = jnp.maximum(y @ fw1.T + fb1, 0.0)
    return y @ fw2.T + fb2


if __name__ == "__main__":
    key = jax.random.PRNGKey(0)
    pkey, xkey = jax.random.split(key)

    in_channels, img, batch = 4, 16, 2   # NaiveCNN(in_channels=4, in_dims=4*16*16)
    params = init_params(pkey, in_channels)
    kparams = convert_params(params, input_size=img)   # one-time layout conversion
    x = jax.random.normal(xkey, (batch, in_channels, img, img), jnp.float32)

    out = jax.block_until_ready(naive_cnn_forward(x, kparams))
    ref = jax.block_until_ready(reference_forward(x, params))

    assert out.shape == (batch, 10)
    # bf16 MXU operands (per perf review) vs. the f32 reference: expected
    # relative differences are ~1e-3; 2e-2 still catches any layout/order bug.
    np.testing.assert_allclose(np.asarray(out), np.asarray(ref),
                               rtol=2e-2, atol=2e-2)
    print("KERNEL_OK")
</pallas_src>

<mosaic_0001>
module attributes {stable_mosaic.version = 11 : i64} {
  func.func @naive_cnn_kernel(%arg0: i32, %arg1: memref<1x4x256xf32, #tpu.memory_space<vmem>>, %arg2: memref<10x36xbf16, #tpu.memory_space<vmem>>, %arg3: memref<10x1xf32, #tpu.memory_space<vmem>>, %arg4: memref<20x90xbf16, #tpu.memory_space<vmem>>, %arg5: memref<20x1xf32, #tpu.memory_space<vmem>>, %arg6: memref<158x25xbf16, #tpu.memory_space<vmem>>, %arg7: memref<500x50xbf16, #tpu.memory_space<vmem>>, %arg8: memref<1x50xf32, #tpu.memory_space<vmem>>, %arg9: memref<50x10xbf16, #tpu.memory_space<vmem>>, %arg10: memref<1x10xf32, #tpu.memory_space<vmem>>, %arg11: memref<1x1x10xf32, #tpu.memory_space<vmem>>) attributes {dimension_semantics = [#tpu.dimension_semantics<parallel>], iteration_bounds = array<i64: 2>, scalar_prefetch = 0 : i64, scratch_operands = 0 : i64, tpu.core_type = #tpu.core_type<tc>, window_params = [{transform_indices = @transform_0, window_bounds = array<i64: 1, 4, 256>}, {pipeline_mode = #tpu.pipeline_mode<synchronous>, transform_indices = @transform_1, window_bounds = array<i64: 10, 36>}, {pipeline_mode = #tpu.pipeline_mode<synchronous>, transform_indices = @transform_2, window_bounds = array<i64: 10, 1>}, {pipeline_mode = #tpu.pipeline_mode<synchronous>, transform_indices = @transform_3, window_bounds = array<i64: 20, 90>}, {pipeline_mode = #tpu.pipeline_mode<synchronous>, transform_indices = @transform_4, window_bounds = array<i64: 20, 1>}, {pipeline_mode = #tpu.pipeline_mode<synchronous>, transform_indices = @transform_5, window_bounds = array<i64: 158, 25>}, {pipeline_mode = #tpu.pipeline_mode<synchronous>, transform_indices = @transform_6, window_bounds = array<i64: 500, 50>}, {pipeline_mode = #tpu.pipeline_mode<synchronous>, transform_indices = @transform_7, window_bounds = array<i64: 1, 50>}, {pipeline_mode = #tpu.pipeline_mode<synchronous>, transform_indices = @transform_8, window_bounds = array<i64: 50, 10>}, {pipeline_mode = #tpu.pipeline_mode<synchronous>, transform_indices = @transform_9, window_bounds = array<i64: 1, 10>}, {transform_indices = @transform_10, window_bounds = array<i64: 1, 1, 10>}]} {
    %c0 = arith.constant 0 : index
    %c0_0 = arith.constant 0 : index
    %0 = vector.load %arg2[%c0, %c0_0] : memref<10x36xbf16, #tpu.memory_space<vmem>>, vector<10x36xbf16>
    %c0_1 = arith.constant 0 : index
    %c0_2 = arith.constant 0 : index
    %1 = vector.load %arg3[%c0_1, %c0_2] : memref<10x1xf32, #tpu.memory_space<vmem>>, vector<10x1xf32>
    %c0_3 = arith.constant 0 : index
    %c0_4 = arith.constant 0 : index
    %2 = vector.load %arg4[%c0_3, %c0_4] : memref<20x90xbf16, #tpu.memory_space<vmem>>, vector<20x90xbf16>
    %c0_5 = arith.constant 0 : index
    %c0_6 = arith.constant 0 : index
    %3 = vector.load %arg5[%c0_5, %c0_6] : memref<20x1xf32, #tpu.memory_space<vmem>>, vector<20x1xf32>
    %c0_7 = arith.constant 0 : index
    %c0_8 = arith.constant 0 : index
    %4 = vector.load %arg6[%c0_7, %c0_8] : memref<158x25xbf16, #tpu.memory_space<vmem>>, vector<158x25xbf16>
    %c0_9 = arith.constant 0 : index
    %c0_10 = arith.constant 0 : index
    %5 = vector.load %arg7[%c0_9, %c0_10] : memref<500x50xbf16, #tpu.memory_space<vmem>>, vector<500x50xbf16>
    %c0_11 = arith.constant 0 : index
    %c0_12 = arith.constant 0 : index
    %6 = vector.load %arg8[%c0_11, %c0_12] : memref<1x50xf32, #tpu.memory_space<vmem>>, vector<1x50xf32>
    %c0_13 = arith.constant 0 : index
    %c0_14 = arith.constant 0 : index
    %7 = vector.load %arg9[%c0_13, %c0_14] : memref<50x10xbf16, #tpu.memory_space<vmem>>, vector<50x10xbf16>
    %c0_15 = arith.constant 0 : index
    %c0_16 = arith.constant 0 : index
    %8 = vector.load %arg10[%c0_15, %c0_16] : memref<1x10xf32, #tpu.memory_space<vmem>>, vector<1x10xf32>
    %c0_17 = arith.constant 0 : index
    %c0_18 = arith.constant 0 : index
    %c0_19 = arith.constant 0 : index
    %9 = vector.load %arg1[%c0_17, %c0_18, %c0_19] : memref<1x4x256xf32, #tpu.memory_space<vmem>>, vector<1x4x256xf32>
    %10 = vector.shape_cast %9 : vector<1x4x256xf32> to vector<4x256xf32>
    %cst = arith.constant 0.000000e+00 : f32
    %11 = vector.broadcast %cst : f32 to vector<4x16xf32>
    %12 = tpu.concatenate %10, %11 in 1 : vector<4x256xf32>, vector<4x16xf32> -> vector<4x272xf32>
    %13 = vector.extract_strided_slice %12 {offsets = [0, 0], sizes = [4, 224], strides = [1, 1]} : vector<4x272xf32> to vector<4x224xf32>
    %14 = vector.extract_strided_slice %12 {offsets = [0, 1], sizes = [4, 224], strides = [1, 1]} : vector<4x272xf32> to vector<4x224xf32>
    %15 = vector.extract_strided_slice %12 {offsets = [0, 2], sizes = [4, 224], strides = [1, 1]} : vector<4x272xf32> to vector<4x224xf32>
    %16 = vector.extract_strided_slice %12 {offsets = [0, 16], sizes = [4, 224], strides = [1, 1]} : vector<4x272xf32> to vector<4x224xf32>
    %17 = vector.extract_strided_slice %12 {offsets = [0, 17], sizes = [4, 224], strides = [1, 1]} : vector<4x272xf32> to vector<4x224xf32>
    %18 = vector.extract_strided_slice %12 {offsets = [0, 18], sizes = [4, 224], strides = [1, 1]} : vector<4x272xf32> to vector<4x224xf32>
    %19 = vector.extract_strided_slice %12 {offsets = [0, 32], sizes = [4, 224], strides = [1, 1]} : vector<4x272xf32> to vector<4x224xf32>
    %20 = vector.extract_strided_slice %12 {offsets = [0, 33], sizes = [4, 224], strides = [1, 1]} : vector<4x272xf32> to vector<4x224xf32>
    %21 = vector.extract_strided_slice %12 {offsets = [0, 34], sizes = [4, 224], strides = [1, 1]} : vector<4x272xf32> to vector<4x224xf32>
    %22 = tpu.concatenate %13, %14, %15, %16, %17, %18, %19, %20, %21 in 0 : vector<4x224xf32>, vector<4x224xf32>, vector<4x224xf32>, vector<4x224xf32>, vector<4x224xf32>, vector<4x224xf32>, vector<4x224xf32>, vector<4x224xf32>, vector<4x224xf32> -> vector<36x224xf32>
    %23 = arith.truncf %22 : vector<36x224xf32> to vector<36x224xbf16>
    %cst_20 = arith.constant dense<0.000000e+00> : vector<10x224xf32>
    %24 = tpu.matmul %0, %23, %cst_20 {dimension_numbers = #tpu.dot_dimension_numbers<[1], [0], [0], [1], [0, 0, 1, 1], [], []>} : vector<10x36xbf16>, vector<36x224xbf16>, vector<10x224xf32> -> vector<10x224xf32>
    %25 = vector.broadcast %1 : vector<10x1xf32> to vector<10x224xf32>
    %26 = arith.addf %24, %25 : vector<10x224xf32>
    %cst_21 = arith.constant 0.000000e+00 : f32
    %27 = vector.broadcast %cst_21 : f32 to vector<10x224xf32>
    %28 = arith.maximumf %26, %27 : vector<10x224xf32>
    %cst_22 = arith.constant 0.000000e+00 : f32
    %29 = vector.broadcast %cst_22 : f32 to vector<10x16xf32>
    %30 = tpu.concatenate %28, %29 in 1 : vector<10x224xf32>, vector<10x16xf32> -> vector<10x240xf32>
    %31 = vector.extract_strided_slice %30 {offsets = [0, 0], sizes = [10, 192], strides = [1, 1]} : vector<10x240xf32> to vector<10x192xf32>
    %32 = vector.extract_strided_slice %30 {offsets = [0, 1], sizes = [10, 192], strides = [1, 1]} : vector<10x240xf32> to vector<10x192xf32>
    %33 = vector.extract_strided_slice %30 {offsets = [0, 2], sizes = [10, 192], strides = [1, 1]} : vector<10x240xf32> to vector<10x192xf32>
    %34 = vector.extract_strided_slice %30 {offsets = [0, 16], sizes = [10, 192], strides = [1, 1]} : vector<10x240xf32> to vector<10x192xf32>
    %35 = vector.extract_strided_slice %30 {offsets = [0, 17], sizes = [10, 192], strides = [1, 1]} : vector<10x240xf32> to vector<10x192xf32>
    %36 = vector.extract_strided_slice %30 {offsets = [0, 18], sizes = [10, 192], strides = [1, 1]} : vector<10x240xf32> to vector<10x192xf32>
    %37 = vector.extract_strided_slice %30 {offsets = [0, 32], sizes = [10, 192], strides = [1, 1]} : vector<10x240xf32> to vector<10x192xf32>
    %38 = vector.extract_strided_slice %30 {offsets = [0, 33], sizes = [10, 192], strides = [1, 1]} : vector<10x240xf32> to vector<10x192xf32>
    %39 = vector.extract_strided_slice %30 {offsets = [0, 34], sizes = [10, 192], strides = [1, 1]} : vector<10x240xf32> to vector<10x192xf32>
    %40 = tpu.concatenate %31, %32, %33, %34, %35, %36, %37, %38, %39 in 0 : vector<10x192xf32>, vector<10x192xf32>, vector<10x192xf32>, vector<10x192xf32>, vector<10x192xf32>, vector<10x192xf32>, vector<10x192xf32>, vector<10x192xf32>, vector<10x192xf32> -> vector<90x192xf32>
    %41 = arith.truncf %40 : vector<90x192xf32> to vector<90x192xbf16>
    %cst_23 = arith.constant dense<0.000000e+00> : vector<20x192xf32>
    %42 = tpu.matmul %2, %41, %cst_23 {dimension_numbers = #tpu.dot_dimension_numbers<[1], [0], [0], [1], [0, 0, 1, 1], [], []>} : vector<20x90xbf16>, vector<90x192xbf16>, vector<20x192xf32> -> vector<20x192xf32>
    %43 = vector.broadcast %3 : vector<20x1xf32> to vector<20x192xf32>
    %44 = arith.addf %42, %43 : vector<20x192xf32>
    %45 = vector.extract_strided_slice %44 {offsets = [0, 0], sizes = [20, 160], strides = [1, 1]} : vector<20x192xf32> to vector<20x160xf32>
    %46 = vector.extract_strided_slice %44 {offsets = [0, 16], sizes = [20, 160], strides = [1, 1]} : vector<20x192xf32> to vector<20x160xf32>
    %47 = arith.maximumf %45, %46 : vector<20x160xf32>
    %48 = vector.extract_strided_slice %44 {offsets = [0, 32], sizes = [20, 160], strides = [1, 1]} : vector<20x192xf32> to vector<20x160xf32>
    %49 = arith.maximumf %47, %48 : vector<20x160xf32>
    %50 = vector.extract_strided_slice %49 {offsets = [0, 0], sizes = [20, 158], strides = [1, 1]} : vector<20x160xf32> to vector<20x158xf32>
    %51 = vector.extract_strided_slice %49 {offsets = [0, 1], sizes = [20, 158], strides = [1, 1]} : vector<20x160xf32> to vector<20x158xf32>
    %52 = arith.maximumf %50, %51 : vector<20x158xf32>
    %53 = vector.extract_strided_slice %49 {offsets = [0, 2], sizes = [20, 158], strides = [1, 1]} : vector<20x160xf32> to vector<20x158xf32>
    %54 = arith.maximumf %52, %53 : vector<20x158xf32>
    %cst_24 = arith.constant 0.000000e+00 : f32
    %55 = vector.broadcast %cst_24 : f32 to vector<20x158xf32>
    %56 = arith.maximumf %54, %55 : vector<20x158xf32>
    %57 = arith.truncf %56 : vector<20x158xf32> to vector<20x158xbf16>
    %cst_25 = arith.constant dense<0.000000e+00> : vector<20x25xf32>
    %58 = tpu.matmul %57, %4, %cst_25 {dimension_numbers = #tpu.dot_dimension_numbers<[1], [0], [0], [1], [0, 0, 1, 1], [], []>} : vector<20x158xbf16>, vector<158x25xbf16>, vector<20x25xf32> -> vector<20x25xf32>
    %59 = vector.extract_strided_slice %58 {offsets = [0, 0], sizes = [1, 25], strides = [1, 1]} : vector<20x25xf32> to vector<1x25xf32>
    %60 = vector.extract_strided_slice %58 {offsets = [1, 0], sizes = [1, 25], strides = [1, 1]} : vector<20x25xf32> to vector<1x25xf32>
    %61 = vector.extract_strided_slice %58 {offsets = [2, 0], sizes = [1, 25], strides = [1, 1]} : vector<20x25xf32> to vector<1x25xf32>
    %62 = vector.extract_strided_slice %58 {offsets = [3, 0], sizes = [1, 25], strides = [1, 1]} : vector<20x25xf32> to vector<1x25xf32>
    %63 = vector.extract_strided_slice %58 {offsets = [4, 0], sizes = [1, 25], strides = [1, 1]} : vector<20x25xf32> to vector<1x25xf32>
    %64 = vector.extract_strided_slice %58 {offsets = [5, 0], sizes = [1, 25], strides = [1, 1]} : vector<20x25xf32> to vector<1x25xf32>
    %65 = vector.extract_strided_slice %58 {offsets = [6, 0], sizes = [1, 25], strides = [1, 1]} : vector<20x25xf32> to vector<1x25xf32>
    %66 = vector.extract_strided_slice %58 {offsets = [7, 0], sizes = [1, 25], strides = [1, 1]} : vector<20x25xf32> to vector<1x25xf32>
    %67 = vector.extract_strided_slice %58 {offsets = [8, 0], sizes = [1, 25], strides = [1, 1]} : vector<20x25xf32> to vector<1x25xf32>
    %68 = vector.extract_strided_slice %58 {offsets = [9, 0], sizes = [1, 25], strides = [1, 1]} : vector<20x25xf32> to vector<1x25xf32>
    %69 = vector.extract_strided_slice %58 {offsets = [10, 0], sizes = [1, 25], strides = [1, 1]} : vector<20x25xf32> to vector<1x25xf32>
    %70 = vector.extract_strided_slice %58 {offsets = [11, 0], sizes = [1, 25], strides = [1, 1]} : vector<20x25xf32> to vector<1x25xf32>
    %71 = vector.extract_strided_slice %58 {offsets = [12, 0], sizes = [1, 25], strides = [1, 1]} : vector<20x25xf32> to vector<1x25xf32>
    %72 = vector.extract_strided_slice %58 {offsets = [13, 0], sizes = [1, 25], strides = [1, 1]} : vector<20x25xf32> to vector<1x25xf32>
    %73 = vector.extract_strided_slice %58 {offsets = [14, 0], sizes = [1, 25], strides = [1, 1]} : vector<20x25xf32> to vector<1x25xf32>
    %74 = vector.extract_strided_slice %58 {offsets = [15, 0], sizes = [1, 25], strides = [1, 1]} : vector<20x25xf32> to vector<1x25xf32>
    %75 = vector.extract_strided_slice %58 {offsets = [16, 0], sizes = [1, 25], strides = [1, 1]} : vector<20x25xf32> to vector<1x25xf32>
    %76 = vector.extract_strided_slice %58 {offsets = [17, 0], sizes = [1, 25], strides = [1, 1]} : vector<20x25xf32> to vector<1x25xf32>
    %77 = vector.extract_strided_slice %58 {offsets = [18, 0], sizes = [1, 25], strides = [1, 1]} : vector<20x25xf32> to vector<1x25xf32>
    %78 = vector.extract_strided_slice %58 {offsets = [19, 0], sizes = [1, 25], strides = [1, 1]} : vector<20x25xf32> to vector<1x25xf32>
    %79 = tpu.concatenate %59, %60, %61, %62, %63, %64, %65, %66, %67, %68, %69, %70, %71, %72, %73, %74 in 1 : vector<1x25xf32>, vector<1x25xf32>, vector<1x25xf32>, vector<1x25xf32>, vector<1x25xf32>, vector<1x25xf32>, vector<1x25xf32>, vector<1x25xf32>, vector<1x25xf32>, vector<1x25xf32>, vector<1x25xf32>, vector<1x25xf32>, vector<1x25xf32>, vector<1x25xf32>, vector<1x25xf32>, vector<1x25xf32> -> vector<1x400xf32>
    %80 = tpu.concatenate %75, %76, %77, %78 in 1 : vector<1x25xf32>, vector<1x25xf32>, vector<1x25xf32>, vector<1x25xf32> -> vector<1x100xf32>
    %81 = tpu.concatenate %79, %80 in 1 : vector<1x400xf32>, vector<1x100xf32> -> vector<1x500xf32>
    %82 = arith.truncf %81 : vector<1x500xf32> to vector<1x500xbf16>
    %cst_26 = arith.constant dense<0.000000e+00> : vector<1x50xf32>
    %83 = tpu.matmul %82, %5, %cst_26 {dimension_numbers = #tpu.dot_dimension_numbers<[1], [0], [0], [1], [0, 0, 1, 1], [], []>} : vector<1x500xbf16>, vector<500x50xbf16>, vector<1x50xf32> -> vector<1x50xf32>
    %84 = arith.addf %83, %6 : vector<1x50xf32>
    %cst_27 = arith.constant 0.000000e+00 : f32
    %85 = vector.broadcast %cst_27 : f32 to vector<1x50xf32>
    %86 = arith.maximumf %84, %85 : vector<1x50xf32>
    %87 = arith.truncf %86 : vector<1x50xf32> to vector<1x50xbf16>
    %cst_28 = arith.constant dense<0.000000e+00> : vector<1x10xf32>
    %88 = tpu.matmul %87, %7, %cst_28 {dimension_numbers = #tpu.dot_dimension_numbers<[1], [0], [0], [1], [0, 0, 1, 1], [], []>} : vector<1x50xbf16>, vector<50x10xbf16>, vector<1x10xf32> -> vector<1x10xf32>
    %89 = arith.addf %88, %8 : vector<1x10xf32>
    %c0_29 = arith.constant 0 : index
    %c0_30 = arith.constant 0 : index
    %c0_31 = arith.constant 0 : index
    %90 = vector.load %arg11[%c0_29, %c0_30, %c0_31] : memref<1x1x10xf32, #tpu.memory_space<vmem>>, vector<1x1x10xf32>
    %91 = vector.shape_cast %90 : vector<1x1x10xf32> to vector<1x10xf32>
    %92 = vector.shape_cast %89 : vector<1x10xf32> to vector<1x1x10xf32>
    tpu.vector_store %arg11[%c0_29, %c0_30, %c0_31], %92 {strides = array<i32>} : memref<1x1x10xf32, #tpu.memory_space<vmem>>, vector<1x1x10xf32>,
    return
  }
  func.func @transform_0(%arg0: i32) -> (i32, i32, i32) {
    %c0_i32 = arith.constant 0 : i32
    %c0_i32_0 = arith.constant 0 : i32
    %c0_i32_1 = arith.constant 0 : i32
    return %arg0, %c0_i32, %c0_i32_0 : i32, i32, i32
  }
  func.func @transform_1(%arg0: i32) -> (i32, i32) {
    %c0_i32 = arith.constant 0 : i32
    %c0_i32_0 = arith.constant 0 : i32
    %c0_i32_1 = arith.constant 0 : i32
    return %c0_i32, %c0_i32_0 : i32, i32
  }
  func.func @transform_2(%arg0: i32) -> (i32, i32) {
    %c0_i32 = arith.constant 0 : i32
    %c0_i32_0 = arith.constant 0 : i32
    %c0_i32_1 = arith.constant 0 : i32
    return %c0_i32, %c0_i32_0 : i32, i32
  }
  func.func @transform_3(%arg0: i32) -> (i32, i32) {
    %c0_i32 = arith.constant 0 : i32
    %c0_i32_0 = arith.constant 0 : i32
    %c0_i32_1 = arith.constant 0 : i32
    return %c0_i32, %c0_i32_0 : i32, i32
  }
  func.func @transform_4(%arg0: i32) -> (i32, i32) {
    %c0_i32 = arith.constant 0 : i32
    %c0_i32_0 = arith.constant 0 : i32
    %c0_i32_1 = arith.constant 0 : i32
    return %c0_i32, %c0_i32_0 : i32, i32
  }
  func.func @transform_5(%arg0: i32) -> (i32, i32) {
    %c0_i32 = arith.constant 0 : i32
    %c0_i32_0 = arith.constant 0 : i32
    %c0_i32_1 = arith.constant 0 : i32
    return %c0_i32, %c0_i32_0 : i32, i32
  }
  func.func @transform_6(%arg0: i32) -> (i32, i32) {
    %c0_i32 = arith.constant 0 : i32
    %c0_i32_0 = arith.constant 0 : i32
    %c0_i32_1 = arith.constant 0 : i32
    return %c0_i32, %c0_i32_0 : i32, i32
  }
  func.func @transform_7(%arg0: i32) -> (i32, i32) {
    %c0_i32 = arith.constant 0 : i32
    %c0_i32_0 = arith.constant 0 : i32
    %c0_i32_1 = arith.constant 0 : i32
    return %c0_i32, %c0_i32_0 : i32, i32
  }
  func.func @transform_8(%arg0: i32) -> (i32, i32) {
    %c0_i32 = arith.constant 0 : i32
    %c0_i32_0 = arith.constant 0 : i32
    %c0_i32_1 = arith.constant 0 : i32
    return %c0_i32, %c0_i32_0 : i32, i32
  }
  func.func @transform_9(%arg0: i32) -> (i32, i32) {
    %c0_i32 = arith.constant 0 : i32
    %c0_i32_0 = arith.constant 0 : i32
    %c0_i32_1 = arith.constant 0 : i32
    return %c0_i32, %c0_i32_0 : i32, i32
  }
  func.func @transform_10(%arg0: i32) -> (i32, i32, i32) {
    %c0_i32 = arith.constant 0 : i32
    %c0_i32_0 = arith.constant 0 : i32
    %c0_i32_1 = arith.constant 0 : i32
    return %arg0, %c0_i32, %c0_i32_0 : i32, i32, i32
  }
}

</mosaic_0001>

<llo_original>
// kernel: naive_cnn_forward.1
$region0: #{naive_cnn_forward.1}
  #allocation0 [shape = 'u32[]', space=smem, size = 0x4, offset = 0x4, fixed_abs, tag = 'smem constant byte address 0x4 - core index']
  #allocation1 [shape = 'u32[144,128]{1,0:T(1,128)}', space=vmem, size = 0x12000, scoped, tag = 'internal scratch']
  %s0 = inlined_call_operand.vmem [shape: f32[2,4,256], index: 0, kind: input, shape index: {}]
  %s1 = inlined_call_operand.vmem [shape: bf16[10,36], index: 1, kind: input, shape index: {}]
  %s2 = inlined_call_operand.vmem [shape: f32[10,1], index: 2, kind: input, shape index: {}]
  %s3 = inlined_call_operand.vmem [shape: bf16[20,90], index: 3, kind: input, shape index: {}]
  %s4 = inlined_call_operand.vmem [shape: f32[20,1], index: 4, kind: input, shape index: {}]
  %s5 = inlined_call_operand.vmem [shape: bf16[158,25], index: 5, kind: input, shape index: {}]
  %s6 = inlined_call_operand.vmem [shape: bf16[500,50], index: 6, kind: input, shape index: {}]
  %s7 = inlined_call_operand.vmem [shape: f32[1,50], index: 7, kind: input, shape index: {}]
  %s8 = inlined_call_operand.vmem [shape: bf16[50,10], index: 8, kind: input, shape index: {}]
  %s9 = inlined_call_operand.vmem [shape: f32[1,10], index: 9, kind: input, shape index: {}]
  %s10 = inlined_call_operand.hbm [shape: f32[2,1,10], index: 10, kind: output, shape index: {}]
  %s11 = sld [smem:[#allocation0]]
  $region73: #{naive_cnn_forward.1} parent=0
    _
  %s13 = ssub.s32 1, %s11
  %s14 = scalar_select 0, %s13, %s11
  $region1: #{naive_cnn_forward.1} parent=0
    #allocation2 [shape = 'u8[1024]{0}', space=vmem, size = 0x400, scoped, tag = 'output window, operand 0']
    #allocation3 [shape = 's32[2]{0}', space=sflag, size = 0x8, scoped, tag = 'scoped memory for naive_cnn_forward.1']
    %15 = vsyncpa [#allocation3], 0
    %s16 = scalar_lea.sflag [#allocation3], 1
    %17 = vsyncpa %s16, 0
    loop: start=0, step=1, limit=4
    $region2: #{naive_cnn_forward.1} parent=1 // loop_pre_header
      _
    $region3: #{naive_cnn_forward.1} parent=1 // loop_header
      %s19 = sphi 0, %s23
      %p20 = scmp.ge.s32.totalorder %s19, 4
      %s29 = sphi 0, %s31
      %s32 = sphi 0, %s29
      %s33 = sphi 0, %s32
      %s49 = sphi 0, %s33
      %s53 = sphi 0, %s53
      %s55 = sphi 0, %s53
      %s56 = sphi 0, %s55
      %s70 = sphi 0, %s56
      %s74 = sphi 0, %s74
      %s76 = sphi 0, %s74
      %s77 = sphi 0, %s76
      %s91 = sphi 0, %s77
      %s95 = sphi 0, %s95
      %s97 = sphi 0, %s95
      %s98 = sphi 0, %s97
      %s112 = sphi 0, %s98
      %s116 = sphi 0, %s116
      %s118 = sphi 0, %s116
      %s119 = sphi 0, %s118
      %s133 = sphi 0, %s119
      %s137 = sphi 0, %s137
      %s139 = sphi 0, %s137
      %s140 = sphi 0, %s139
      %s154 = sphi 0, %s140
      %s158 = sphi 0, %s158
      %s160 = sphi 0, %s158
      %s161 = sphi 0, %s160
      %s175 = sphi 0, %s161
      %s179 = sphi 0, %s179
      %s181 = sphi 0, %s179
      %s182 = sphi 0, %s181
      %s196 = sphi 0, %s182
      %s200 = sphi 0, %s200
      %s202 = sphi 0, %s200
      %s203 = sphi 0, %s202
      %s217 = sphi 0, %s203
      %s221 = sphi 0, %s221
      %s223 = sphi 0, %s221
      %s224 = sphi 0, %s223
      %s238 = sphi 0, %s224
      %s244 = sphi 0, %s246
      %s247 = sphi 0, %s244
      %s248 = sphi 0, %s247
      %s264 = sphi 0, %s248
    $region4: #{naive_cnn_forward.1} parent=1 // loop_header_branch
      %22 = sbr.rel (%p20) target = $region8
    $region5: #{naive_cnn_forward.1} parent=1 // loop_body
      %s24 = ssub.s32 %s19, 1
      %s25 = ssub.s32 %s19, 2
      %s26 = sadd.s32 %s19, 1
      %s27 = ssub.s32 %s19, %s26
      %p28 = scmp.eq.s32.totalorder %s27, 0
      %s30 = sadd.s32 %s29, 1
      %s31 = scalar_select %p28, %s29, %s30
      %p34 = pneg %p28
      %p35 = scmp.eq.s32.totalorder %s19, 1
      %p36 = por %p34, %p35
      %p37 = scmp.ne.s32.totalorder %s29, %s32
      %p38 = scmp.eq.s32.totalorder %s19, 0
      %p39 = por %p37, %p38
      %p40 = scmp.ne.s32.totalorder %s29, %s32
      %p41 = scmp.eq.s32.totalorder %s24, 1
      %p42 = por %p40, %p41
      %p43 = scmp.ne.s32.totalorder %s32, %s33
      %p44 = scmp.eq.s32.totalorder %s24, 0
      %p45 = por %p43, %p44
      %p46 = scmp.ne.s32.totalorder %s32, %s33
      %p47 = scmp.eq.s32.totalorder %s25, 1
      %p48 = por %p46, %p47
      %p50 = scmp.ne.s32.totalorder %s33, %s49
      %p51 = scmp.eq.s32.totalorder %s25, 0
      %p52 = por %p50, %p51
      %s54 = sadd.s32 %s53, 1
      %p57 = scmp.eq.s32.totalorder %s19, 1
      %p58 = scmp.ne.s32.totalorder %s53, %s55
      %p59 = scmp.eq.s32.totalorder %s19, 0
      %p60 = por %p58, %p59
      %p61 = scmp.ne.s32.totalorder %s53, %s55
      %p62 = scmp.eq.s32.totalorder %s24, 1
      %p63 = por %p61, %p62
      %p64 = scmp.ne.s32.totalorder %s55, %s56
      %p65 = scmp.eq.s32.totalorder %s24, 0
      %p66 = por %p64, %p65
      %p67 = scmp.ne.s32.totalorder %s55, %s56
      %p68 = scmp.eq.s32.totalorder %s25, 1
      %p69 = por %p67, %p68
      %p71 = scmp.ne.s32.totalorder %s56, %s70
      %p72 = scmp.eq.s32.totalorder %s25, 0
      %p73 = por %p71, %p72
      %s75 = sadd.s32 %s74, 1
      %p78 = scmp.eq.s32.totalorder %s19, 1
      %p79 = scmp.ne.s32.totalorder %s74, %s76
      %p80 = scmp.eq.s32.totalorder %s19, 0
      %p81 = por %p79, %p80
      %p82 = scmp.ne.s32.totalorder %s74, %s76
      %p83 = scmp.eq.s32.totalorder %s24, 1
      %p84 = por %p82, %p83
      %p85 = scmp.ne.s32.totalorder %s76, %s77
      %p86 = scmp.eq.s32.totalorder %s24, 0
      %p87 = por %p85, %p86
      %p88 = scmp.ne.s32.totalorder %s76, %s77
      %p89 = scmp.eq.s32.totalorder %s25, 1
      %p90 = por %p88, %p89
      %p92 = scmp.ne.s32.totalorder %s77, %s91
      %p93 = scmp.eq.s32.totalorder %s25, 0
      %p94 = por %p92, %p93
      %s96 = sadd.s32 %s95, 1
      %p99 = scmp.eq.s32.totalorder %s19, 1
      %p100 = scmp.ne.s32.totalorder %s95, %s97
      %p101 = scmp.eq.s32.totalorder %s19, 0
      %p102 = por %p100, %p101
      %p103 = scmp.ne.s32.totalorder %s95, %s97
      %p104 = scmp.eq.s32.totalorder %s24, 1
      %p105 = por %p103, %p104
      %p106 = scmp.ne.s32.totalorder %s97, %s98
      %p107 = scmp.eq.s32.totalorder %s24, 0
      %p108 = por %p106, %p107
      %p109 = scmp.ne.s32.totalorder %s97, %s98
      %p110 = scmp.eq.s32.totalorder %s25, 1
      %p111 = por %p109, %p110
      %p113 = scmp.ne.s32.totalorder %s98, %s112
      %p114 = scmp.eq.s32.totalorder %s25, 0
      %p115 = por %p113, %p114
      %s117 = sadd.s32 %s116, 1
      %p120 = scmp.eq.s32.totalorder %s19, 1
      %p121 = scmp.ne.s32.totalorder %s116, %s118
      %p122 = scmp.eq.s32.totalorder %s19, 0
      %p123 = por %p121, %p122
      %p124 = scmp.ne.s32.totalorder %s116, %s118
      %p125 = scmp.eq.s32.totalorder %s24, 1
      %p126 = por %p124, %p125
      %p127 = scmp.ne.s32.totalorder %s118, %s119
      %p128 = scmp.eq.s32.totalorder %s24, 0
      %p129 = por %p127, %p128
      %p130 = scmp.ne.s32.totalorder %s118, %s119
      %p131 = scmp.eq.s32.totalorder %s25, 1
      %p132 = por %p130, %p131
      %p134 = scmp.ne.s32.totalorder %s119, %s133
      %p135 = scmp.eq.s32.totalorder %s25, 0
      %p136 = por %p134, %p135
      %s138 = sadd.s32 %s137, 1
      %p141 = scmp.eq.s32.totalorder %s19, 1
      %p142 = scmp.ne.s32.totalorder %s137, %s139
      %p143 = scmp.eq.s32.totalorder %s19, 0
      %p144 = por %p142, %p143
      %p145 = scmp.ne.s32.totalorder %s137, %s139
      %p146 = scmp.eq.s32.totalorder %s24, 1
      %p147 = por %p145, %p146
      %p148 = scmp.ne.s32.totalorder %s139, %s140
      %p149 = scmp.eq.s32.totalorder %s24, 0
      %p150 = por %p148, %p149
      %p151 = scmp.ne.s32.totalorder %s139, %s140
      %p152 = scmp.eq.s32.totalorder %s25, 1
      %p153 = por %p151, %p152
      %p155 = scmp.ne.s32.totalorder %s140, %s154
      %p156 = scmp.eq.s32.totalorder %s25, 0
      %p157 = por %p155, %p156
      %s159 = sadd.s32 %s158, 1
      %p162 = scmp.eq.s32.totalorder %s19, 1
      %p163 = scmp.ne.s32.totalorder %s158, %s160
      %p164 = scmp.eq.s32.totalorder %s19, 0
      %p165 = por %p163, %p164
      %p166 = scmp.ne.s32.totalorder %s158, %s160
      %p167 = scmp.eq.s32.totalorder %s24, 1
      %p168 = por %p166, %p167
      %p169 = scmp.ne.s32.totalorder %s160, %s161
      %p170 = scmp.eq.s32.totalorder %s24, 0
      %p171 = por %p169, %p170
      %p172 = scmp.ne.s32.totalorder %s160, %s161
      %p173 = scmp.eq.s32.totalorder %s25, 1
      %p174 = por %p172, %p173
      %p176 = scmp.ne.s32.totalorder %s161, %s175
      %p177 = scmp.eq.s32.totalorder %s25, 0
      %p178 = por %p176, %p177
      %s180 = sadd.s32 %s179, 1
      %p183 = scmp.eq.s32.totalorder %s19, 1
      %p184 = scmp.ne.s32.totalorder %s179, %s181
      %p185 = scmp.eq.s32.totalorder %s19, 0
      %p186 = por %p184, %p185
      %p187 = scmp.ne.s32.totalorder %s179, %s181
      %p188 = scmp.eq.s32.totalorder %s24, 1
      %p189 = por %p187, %p188
      %p190 = scmp.ne.s32.totalorder %s181, %s182
      %p191 = scmp.eq.s32.totalorder %s24, 0
      %p192 = por %p190, %p191
      %p193 = scmp.ne.s32.totalorder %s181, %s182
      %p194 = scmp.eq.s32.totalorder %s25, 1
      %p195 = por %p193, %p194
      %p197 = scmp.ne.s32.totalorder %s182, %s196
      %p198 = scmp.eq.s32.totalorder %s25, 0
      %p199 = por %p197, %p198
      %s201 = sadd.s32 %s200, 1
      %p204 = scmp.eq.s32.totalorder %s19, 1
      %p205 = scmp.ne.s32.totalorder %s200, %s202
      %p206 = scmp.eq.s32.totalorder %s19, 0
      %p207 = por %p205, %p206
      %p208 = scmp.ne.s32.totalorder %s200, %s202
      %p209 = scmp.eq.s32.totalorder %s24, 1
      %p210 = por %p208, %p209
      %p211 = scmp.ne.s32.totalorder %s202, %s203
      %p212 = scmp.eq.s32.totalorder %s24, 0
      %p213 = por %p211, %p212
      %p214 = scmp.ne.s32.totalorder %s202, %s203
      %p215 = scmp.eq.s32.totalorder %s25, 1
      %p216 = por %p214, %p215
      %p218 = scmp.ne.s32.totalorder %s203, %s217
      %p219 = scmp.eq.s32.totalorder %s25, 0
      %p220 = por %p218, %p219
      %s222 = sadd.s32 %s221, 1
      %p225 = scmp.eq.s32.totalorder %s19, 1
      %p226 = scmp.ne.s32.totalorder %s221, %s223
      %p227 = scmp.eq.s32.totalorder %s19, 0
      %p228 = por %p226, %p227
      %p229 = scmp.ne.s32.totalorder %s221, %s223
      %p230 = scmp.eq.s32.totalorder %s24, 1
      %p231 = por %p229, %p230
      %p232 = scmp.ne.s32.totalorder %s223, %s224
      %p233 = scmp.eq.s32.totalorder %s24, 0
      %p234 = por %p232, %p233
      %p235 = scmp.ne.s32.totalorder %s223, %s224
      %p236 = scmp.eq.s32.totalorder %s25, 1
      %p237 = por %p235, %p236
      %p239 = scmp.ne.s32.totalorder %s224, %s238
      %p240 = scmp.eq.s32.totalorder %s25, 0
      %p241 = por %p239, %p240
      %s242 = ssub.s32 %s19, %s26
      %p243 = scmp.eq.s32.totalorder %s242, 0
      %s245 = sadd.s32 %s244, 1
      %s246 = scalar_select %p243, %s244, %s245
      %p249 = pneg %p243
      %p250 = scmp.eq.s32.totalorder %s19, 1
      %p251 = por %p249, %p250
      %p252 = scmp.ne.s32.totalorder %s244, %s247
      %p253 = scmp.eq.s32.totalorder %s19, 0
      %p254 = por %p252, %p253
      %p255 = scmp.ne.s32.totalorder %s244, %s247
      %p256 = scmp.eq.s32.totalorder %s24, 1
      %p257 = por %p255, %p256
      %p258 = scmp.ne.s32.totalorder %s247, %s248
      %p259 = scmp.eq.s32.totalorder %s24, 0
      %p260 = por %p258, %p259
      %p261 = scmp.ne.s32.totalorder %s247, %s248
      %p262 = scmp.eq.s32.totalorder %s25, 1
      %p263 = por %p261, %p262
      %p265 = scmp.ne.s32.totalorder %s248, %s264
      %p266 = scmp.eq.s32.totalorder %s25, 0
      %p267 = por %p265, %p266
      %p268 = scmp.le.s32.totalorder 1, %s19
      %p269 = scmp.lt.s32.totalorder %s19, 3
      %p270 = pnand %p268, %p269
      %p271 = pneg %p270
      // Predicated region
      $region9: #{naive_cnn_forward.1} parent=5 // pred_check
        _
      $region10: #{naive_cnn_forward.1} parent=5 // pred_check_branch
        %273 = sbr.rel (%p270) target = $region12
      $region11: #{naive_cnn_forward.1} parent=5 // pred_region
        %s274 = ssub.s32 %s19, 1
        // Predicated region
        $region13: #{naive_cnn_forward.1} parent=11 // pred_check
          %p275 = pneg %p66
        $region14: #{naive_cnn_forward.1} parent=11 // pred_check_branch
          %277 = sbr.rel (%p275) target = $region16
        $region15: #{naive_cnn_forward.1} parent=11 // pred_region
          _
        $region16: #{naive_cnn_forward.1} parent=11 // pred_fallthru
          _
        // Predicated region
        $region17: #{naive_cnn_forward.1} parent=11 // pred_check
          %p278 = pneg %p87
        $region18: #{naive_cnn_forward.1} parent=11 // pred_check_branch
          %280 = sbr.rel (%p278) target = $region20
        $region19: #{naive_cnn_forward.1} parent=11 // pred_region
          _
        $region20: #{naive_cnn_forward.1} parent=11 // pred_fallthru
          _
        // Predicated region
        $region21: #{naive_cnn_forward.1} parent=11 // pred_check
          %p281 = pneg %p108
        $region22: #{naive_cnn_forward.1} parent=11 // pred_check_branch
          %283 = sbr.rel (%p281) target = $region24
        $region23: #{naive_cnn_forward.1} parent=11 // pred_region
          _
        $region24: #{naive_cnn_forward.1} parent=11 // pred_fallthru
          _
        // Predicated region
        $region25: #{naive_cnn_forward.1} parent=11 // pred_check
          %p284 = pneg %p129
        $region26: #{naive_cnn_forward.1} parent=11 // pred_check_branch
          %286 = sbr.rel (%p284) target = $region28
        $region27: #{naive_cnn_forward.1} parent=11 // pred_region
          _
        $region28: #{naive_cnn_forward.1} parent=11 // pred_fallthru
          _
        // Predicated region
        $region29: #{naive_cnn_forward.1} parent=11 // pred_check
          %p287 = pneg %p150
        $region30: #{naive_cnn_forward.1} parent=11 // pred_check_branch
          %289 = sbr.rel (%p287) target = $region32
        $region31: #{naive_cnn_forward.1} parent=11 // pred_region
          _
        $region32: #{naive_cnn_forward.1} parent=11 // pred_fallthru
          _
        // Predicated region
        $region33: #{naive_cnn_forward.1} parent=11 // pred_check
          %p290 = pneg %p171
        $region34: #{naive_cnn_forward.1} parent=11 // pred_check_branch
          %292 = sbr.rel (%p290) target = $region36
        $region35: #{naive_cnn_forward.1} parent=11 // pred_region
          _
        $region36: #{naive_cnn_forward.1} parent=11 // pred_fallthru
          _
        // Predicated region
        $region37: #{naive_cnn_forward.1} parent=11 // pred_check
          %p293 = pneg %p192
        $region38: #{naive_cnn_forward.1} parent=11 // pred_check_branch
          %295 = sbr.rel (%p293) target = $region40
        $region39: #{naive_cnn_forward.1} parent=11 // pred_region
          _
        $region40: #{naive_cnn_forward.1} parent=11 // pred_fallthru
          _
        // Predicated region
        $region41: #{naive_cnn_forward.1} parent=11 // pred_check
          %p296 = pneg %p213
        $region42: #{naive_cnn_forward.1} parent=11 // pred_check_branch
          %298 = sbr.rel (%p296) target = $region44
        $region43: #{naive_cnn_forward.1} parent=11 // pred_region
          _
        $region44: #{naive_cnn_forward.1} parent=11 // pred_fallthru
          _
        // Predicated region
        $region45: #{naive_cnn_forward.1} parent=11 // pred_check
          %p299 = pneg %p234
        $region46: #{naive_cnn_forward.1} parent=11 // pred_check_branch
          %301 = sbr.rel (%p299) target = $region48
        $region47: #{naive_cnn_forward.1} parent=11 // pred_region
          _
        $region48: #{naive_cnn_forward.1} parent=11 // pred_fallthru
          _
      $region12: #{naive_cnn_forward.1} parent=5 // pred_fallthru
        _
      %p302 = scmp.lt.s32.totalorder %s19, 2
      // Predicated region
      $region49: #{naive_cnn_forward.1} parent=5 // pred_check
        %p303 = pneg %p302
      $region50: #{naive_cnn_forward.1} parent=5 // pred_check_branch
        %305 = sbr.rel (%p303) target = $region52
      $region51: #{naive_cnn_forward.1} parent=5 // pred_region
        // Predicated region
        $region53: #{naive_cnn_forward.1} parent=51 // pred_check
          %p306 = pneg %p39
        $region54: #{naive_cnn_forward.1} parent=51 // pred_check_branch
          %308 = sbr.rel (%p306) target = $region56
        $region55: #{naive_cnn_forward.1} parent=51 // pred_region
          %p309 = scmp.lt.s32.totalorder %s19, 1
          %s310 = scalar_select %p309, %s19, 1
          %s311 = smul.addr %s310, 2
          %s312 = smul.addr %s311, 4
          %s313 = scalar_lea.vmem %s0, %s312
        $region56: #{naive_cnn_forward.1} parent=51 // pred_fallthru
          _
      $region52: #{naive_cnn_forward.1} parent=5 // pred_fallthru
        _
      %p314 = scmp.le.s32.totalorder 1, %s19
      %p315 = scmp.lt.s32.totalorder %s19, 3
      %p316 = pnand %p314, %p315
      %p317 = pneg %p316
      // Predicated region
      $region57: #{naive_cnn_forward.1} parent=5 // pred_check
        _
      $region58: #{naive_cnn_forward.1} parent=5 // pred_check_branch
        %319 = sbr.rel (%p316) target = $region60
      $region59: #{naive_cnn_forward.1} parent=5 // pred_region
        %s320 = ssub.s32 %s19, 1
        %p321 = scmp.lt.s32.totalorder %s24, 1
        %s322 = scalar_select %p321, %s24, 1
        %s323 = smul.addr %s322, 2
        %s324 = smul.addr %s323, 4
        %s325 = scalar_lea.vmem %s0, %s324
        %p326 = pneg %p45
        %p327 = pneg %p42
        %p328 = pneg %p66
        %p329 = pneg %p63
        %p330 = pneg %p87
        %p331 = pneg %p84
        %p332 = pneg %p108
        %p333 = pneg %p105
        %p334 = pneg %p129
        %p335 = pneg %p126
        %p336 = pneg %p150
        %p337 = pneg %p147
        %p338 = pneg %p171
        %p339 = pneg %p168
        %p340 = pneg %p192
        %p341 = pneg %p189
        %p342 = pneg %p213
        %p343 = pneg %p210
        %p344 = pneg %p234
        %p345 = pneg %p231
        %p346 = pneg %p260
        %p347 = pneg %p257
        %s348 = sand.u32 %s247, 1
        %s349 = scalar_lea.sflag [#allocation3], %s348
        %s350 = sand.u32 %s247, 1
        %s351 = scalar_lea.vmem [#allocation2], %s350
        %p352 = scmp.lt.s32.totalorder %s24, 1
        %s353 = scalar_select %p352, %s24, 1
        %s354 = smul.addr %s353, 2
        %s355 = smul.addr %s354, 4
        %s356 = scalar_lea.vmem %s0, %s355
        %v358 = vld [vmem:[%s1] sm:$0xf]
        %v359 = vld [vmem:[%s1 + $0x4] sm:$0x1]
        %v360 = vld [vmem:[%s2] sm:$0xff]
        %v361 = vld [vmem:[%s2 + $0x8] sm:$0x3]
        %v362 = vld [vmem:[%s3] sm:$0xf]
        %v363 = vld [vmem:[%s3 + $0x4] sm:$0xf]
        %v364 = vld [vmem:[%s3 + $0x8] sm:$0x3]
        %v365 = vld [vmem:[%s4] sm:$0xff]
        %v366 = vld [vmem:[%s4 + $0x8] sm:$0xff]
        %v367 = vld [vmem:[%s4 + $0x10] sm:$0xf]
        %v368 = vld [vmem:[%s5] sm:$0xf]
        %v369 = vld [vmem:[%s5 + $0x4] sm:$0xf]
        %v370 = vld [vmem:[%s5 + $0x8] sm:$0xf]
        %v371 = vld [vmem:[%s5 + $0xc] sm:$0xf]
        %v372 = vld [vmem:[%s5 + $0x10] sm:$0xf]
        %v373 = vld [vmem:[%s5 + $0x14] sm:$0xf]
        %v374 = vld [vmem:[%s5 + $0x18] sm:$0xf]
        %v375 = vld [vmem:[%s5 + $0x1c] sm:$0xf]
        %v376 = vld [vmem:[%s5 + $0x20] sm:$0xf]
        %v377 = vld [vmem:[%s5 + $0x24] sm:$0xf]
        %v378 = vld [vmem:[%s5 + $0x28] sm:$0xf]
        %v379 = vld [vmem:[%s5 + $0x2c] sm:$0xf]
        %v380 = vld [vmem:[%s5 + $0x30] sm:$0xf]
        %v381 = vld [vmem:[%s5 + $0x34] sm:$0xf]
        %v382 = vld [vmem:[%s5 + $0x38] sm:$0xf]
        %v383 = vld [vmem:[%s5 + $0x3c] sm:$0xf]
        %v384 = vld [vmem:[%s5 + $0x40] sm:$0xf]
        %v385 = vld [vmem:[%s5 + $0x44] sm:$0xf]
        %v386 = vld [vmem:[%s5 + $0x48] sm:$0xf]
        %v387 = vld [vmem:[%s5 + $0x4c] sm:$0x7]
        %v388 = vld [vmem:[%s6] sm:$0xf]
        %v389 = vld [vmem:[%s6 + $0x4] sm:$0xf]
        %v390 = vld [vmem:[%s6 + $0x8] sm:$0xf]
        %v391 = vld [vmem:[%s6 + $0xc] sm:$0xf]
        %v392 = vld [vmem:[%s6 + $0x10] sm:$0xf]
        %v393 = vld [vmem:[%s6 + $0x14] sm:$0xf]
        %v394 = vld [vmem:[%s6 + $0x18] sm:$0xf]
        %v395 = vld [vmem:[%s6 + $0x1c] sm:$0xf]
        %v396 = vld [vmem:[%s6 + $0x20] sm:$0xf]
        %v397 = vld [vmem:[%s6 + $0x24] sm:$0xf]
        %v398 = vld [vmem:[%s6 + $0x28] sm:$0xf]
        %v399 = vld [vmem:[%s6 + $0x2c] sm:$0xf]
        %v400 = vld [vmem:[%s6 + $0x30] sm:$0xf]
        %v401 = vld [vmem:[%s6 + $0x34] sm:$0xf]
        %v402 = vld [vmem:[%s6 + $0x38] sm:$0xf]
        %v403 = vld [vmem:[%s6 + $0x3c] sm:$0xf]
        %v404 = vld [vmem:[%s6 + $0x40] sm:$0xf]
        %v405 = vld [vmem:[%s6 + $0x44] sm:$0xf]
        %v406 = vld [vmem:[%s6 + $0x48] sm:$0xf]
        %v407 = vld [vmem:[%s6 + $0x4c] sm:$0xf]
        %v408 = vld [vmem:[%s6 + $0x50] sm:$0xf]
        %v409 = vld [vmem:[%s6 + $0x54] sm:$0xf]
        %v410 = vld [vmem:[%s6 + $0x58] sm:$0xf]
        %v411 = vld [vmem:[%s6 + $0x5c] sm:$0xf]
        %v412 = vld [vmem:[%s6 + $0x60] sm:$0xf]
        %v413 = vld [vmem:[%s6 + $0x64] sm:$0xf]
        %v414 = vld [vmem:[%s6 + $0x68] sm:$0xf]
        %v415 = vld [vmem:[%s6 + $0x6c] sm:$0xf]
        %v416 = vld [vmem:[%s6 + $0x70] sm:$0xf]
        %v417 = vld [vmem:[%s6 + $0x74] sm:$0xf]
        %v418 = vld [vmem:[%s6 + $0x78] sm:$0xf]
        %v419 = vld [vmem:[%s6 + $0x7c] sm:$0xf]
        %v420 = vld [vmem:[%s6 + $0x80] sm:$0xf]
        %v421 = vld [vmem:[%s6 + $0x84] sm:$0xf]
        %v422 = vld [vmem:[%s6 + $0x88] sm:$0xf]
        %v423 = vld [vmem:[%s6 + $0x8c] sm:$0xf]
        %v424 = vld [vmem:[%s6 + $0x90] sm:$0xf]
        %v425 = vld [vmem:[%s6 + $0x94] sm:$0xf]
        %v426 = vld [vmem:[%s6 + $0x98] sm:$0xf]
        %v427 = vld [vmem:[%s6 + $0x9c] sm:$0xf]
        %v428 = vld [vmem:[%s6 + $0xa0] sm:$0xf]
        %v429 = vld [vmem:[%s6 + $0xa4] sm:$0xf]
        %v430 = vld [vmem:[%s6 + $0xa8] sm:$0xf]
        %v431 = vld [vmem:[%s6 + $0xac] sm:$0xf]
        %v432 = vld [vmem:[%s6 + $0xb0] sm:$0xf]
        %v433 = vld [vmem:[%s6 + $0xb4] sm:$0xf]
        %v434 = vld [vmem:[%s6 + $0xb8] sm:$0xf]
        %v435 = vld [vmem:[%s6 + $0xbc] sm:$0xf]
        %v436 = vld [vmem:[%s6 + $0xc0] sm:$0xf]
        %v437 = vld [vmem:[%s6 + $0xc4] sm:$0xf]
        %v438 = vld [vmem:[%s6 + $0xc8] sm:$0xf]
        %v439 = vld [vmem:[%s6 + $0xcc] sm:$0xf]
        %v440 = vld [vmem:[%s6 + $0xd0] sm:$0xf]
        %v441 = vld [vmem:[%s6 + $0xd4] sm:$0xf]
        %v442 = vld [vmem:[%s6 + $0xd8] sm:$0xf]
        %v443 = vld [vmem:[%s6 + $0xdc] sm:$0xf]
        %v444 = vld [vmem:[%s6 + $0xe0] sm:$0xf]
        %v445 = vld [vmem:[%s6 + $0xe4] sm:$0xf]
        %v446 = vld [vmem:[%s6 + $0xe8] sm:$0xf]
        %v447 = vld [vmem:[%s6 + $0xec] sm:$0xf]
        %v448 = vld [vmem:[%s6 + $0xf0] sm:$0xf]
        %v449 = vld [vmem:[%s6 + $0xf4] sm:$0xf]
        %v450 = vld [vmem:[%s6 + $0xf8] sm:$0x3]
        %v451 = vld [vmem:[%s7] sm:$0x1]
        %v452 = vld [vmem:[%s8] sm:$0xf]
        %v453 = vld [vmem:[%s8 + $0x4] sm:$0xf]
        %v454 = vld [vmem:[%s8 + $0x8] sm:$0xf]
        %v455 = vld [vmem:[%s8 + $0xc] sm:$0xf]
        %v456 = vld [vmem:[%s8 + $0x10] sm:$0xf]
        %v457 = vld [vmem:[%s8 + $0x14] sm:$0xf]
        %v458 = vld [vmem:[%s8 + $0x18] sm:$0x1]
        %v459 = vld [vmem:[%s9] sm:$0x1]
        %v460 = vld [vmem:[%s356] sm:$0xff]
        %v462 = vcombine.high %v460, %v460
        %v464 = vrot.slane %v460, 4
        %v465 = vrot.slane %v462, 4
        %466 = vrot.lane.b32.xlu0 %v464, 127
        %v467 = vpop.permute.xlu0 %466
        %468 = vrot.lane.b32.xlu0 %v465, 127
        %v469 = vpop.permute.xlu0 %468
        %vm470 = vcmask 1039360
        %v471 = vsel %vm470, %v467, %v469
        %474 = vrot.lane.b32.xlu0 %v460, 126
        %v475 = vpop.permute.xlu0 %474
        %476 = vrot.lane.b32.xlu0 %v462, 126
        %v477 = vpop.permute.xlu0 %476
        %vm478 = vcmask 1031168
        %v479 = vsel %vm478, %v475, %v477
        %482 = vrot.lane.b32.xlu0 %v464, 112
        %v483 = vpop.permute.xlu0 %482
        %484 = vrot.lane.b32.xlu0 %v465, 112
        %v485 = vpop.permute.xlu0 %484
        %vm486 = vcmask 916480
        %v487 = vsel %vm486, %v483, %v485
        %490 = vrot.lane.b32.xlu0 %v460, 111
        %v491 = vpop.permute.xlu0 %490
        %492 = vrot.lane.b32.xlu0 %v462, 111
        %v493 = vpop.permute.xlu0 %492
        %vm494 = vcmask 908288
        %v495 = vsel %vm494, %v491, %v493
        %498 = vrot.lane.b32.xlu0 %v464, 110
        %v499 = vpop.permute.xlu0 %498
        %500 = vrot.lane.b32.xlu0 %v465, 110
        %v501 = vpop.permute.xlu0 %500
        %vm502 = vcmask 900096
        %v503 = vsel %vm502, %v499, %v501
        %506 = vrot.lane.b32.xlu0 %v460, 96
        %v507 = vpop.permute.xlu0 %506
        %508 = vrot.lane.b32.xlu0 %v462, 96
        %v509 = vpop.permute.xlu0 %508
        %vm510 = vcmask 785408
        %v511 = vsel %vm510, %v507, %v509
        %v515 = vrot.slane 0.0, 4
        %516 = vrot.lane.b32.xlu0 %v464, 95
        %v517 = vpop.permute.xlu0 %516
        %518 = vrot.lane.b32.xlu0 %v465, 95
        %v519 = vpop.permute.xlu0 %518
        %520 = vrot.lane.b32.xlu0 %v515, 95
        %v521 = vpop.permute.xlu0 %520
        %vm522 = vcmask 777216
        %v523 = vsel %vm522, %v517, %v519
        %v524 = vsel %vm522, %v519, %v521
        %527 = vrot.lane.b32.xlu0 %v460, 94
        %v528 = vpop.permute.xlu0 %527
        %529 = vrot.lane.b32.xlu0 %v462, 94
        %v530 = vpop.permute.xlu0 %529
        %531 = vrot.lane.b32.xlu0 0.0, 94
        %v532 = vpop.permute.xlu0 %531
        %vm533 = vcmask 769024
        %v534 = vsel %vm533, %v528, %v530
        %v535 = vsel %vm533, %v530, %v532
        %vm538 = vcmask 1043456
        %v539 = vsel %vm538, %v460, %v471
        %v540 = vsel %vm538, %v462, %v469
        %v541 = vsel %vm538, %v479, %v487
        %v542 = vsel %vm538, %v477, %v485
        %v543 = vsel %vm538, %v495, %v503
        %v544 = vsel %vm538, %v493, %v501
        %v545 = vsel %vm538, %v511, %v523
        %v546 = vsel %vm538, %v509, %v524
        %v547 = vpack.c.bf16 %v541, %v539
        %v548 = vpack.c.bf16 %v542, %v540
        %v549 = vpack.c.bf16 %v545, %v543
        %v550 = vpack.c.bf16 %v546, %v544
        %v551 = vpack.c.bf16 %v534, %v534
        %v552 = vpack.c.bf16 %v535, %v535
        %554 = vset.pattern.permute.xlu0 0
        %555 = vperm.xlu0 %554, %v360
        %v556 = vpop.permute.xlu0 %555
        %559 = vset.pattern.permute.xlu0 0
        %560 = vperm.xlu0 %559, %v361
        %v561 = vpop.permute.xlu0 %560
        %v565 = vunpack.c.l.b16 %v358
        %v566 = vunpack.c.l.b16 %v359
        %v567 = vpack.c.b16 %v566, %v565
        %vm568 = vcmask 293888
        %v570 = vsel %vm568, %v567, 0
        %vm572 = vcmask 1041408
        %v574 = vsel %vm572, %v551, 0
        %v577 = vsel %vm572, %v552, 0
        %579 = vmatprep.subr.bf16.mxu0 0
        %580 = vmatpush1.bf16.msra.mxu0 0
        %581 = vmatprep.subr.bf16.mxu0 0
        %582 = vmatpush1.bf16.msra.mxu0 0
        %583 = vmatprep.subr.bf16.mxu0 0
        %584 = vmatpush1.bf16.msra.mxu0 0
        %585 = vmatprep.subr.bf16.mxu0 0
        %586 = vmatpush1.bf16.msra.mxu0 0
        %587 = vmatprep.subr.bf16.mxu0 0
        %588 = vmatpush1.bf16.msra.mxu0 0
        %589 = vmatprep.subr.bf16.mxu0 %v577
        %590 = vmatpush1.bf16.msra.mxu0 %v574
        %591 = vmatprep.subr.bf16.mxu0 %v550
        %592 = vmatpush1.bf16.msra.mxu0 %v549
        %593 = vmatprep.subr.bf16.mxu0 %v548
        %594 = vmatpush1.bf16.msra.mxu0 %v547
        %595 = vmatprep.subr.bf16.mxu0 0
        %596 = vmatpush2.bf16.msra.mxu0 0
        %597 = vmatprep.subr.bf16.mxu0 0
        %598 = vmatpush2.bf16.msra.mxu0 0
        %599 = vmatprep.subr.bf16.mxu0 0
        %600 = vmatpush2.bf16.msra.mxu0 0
        %601 = vmatprep.subr.bf16.mxu0 0
        %602 = vmatpush2.bf16.msra.mxu0 0
        %603 = vmatprep.subr.bf16.mxu0 0
        %604 = vmatpush2.bf16.msra.mxu0 0
        %605 = vmatprep.subr.bf16.mxu0 0
        %606 = vmatpush2.bf16.msra.mxu0 0
        %607 = vmatprep.subr.bf16.mxu0 0
        %608 = vmatpush2.bf16.msra.mxu0 0
        %609 = vmatprep.subr.bf16.mxu0 0
        %610 = vmatpush2.bf16.msra.mxu0 0
        %611 = vmatprep.mubr.bf16.mxu0 0
        %612 = vmatmul.mubr.bf16.gmra.mxu0 %v570
        %v613 = vpop.f32.mrf.mxu0
        %v614 = vadd.f32 %v556, %v613
        %v615 = vpop.f32.mrf.mxu0
        %v616 = vadd.f32 %v556, %v615
        %v617 = vpop.f32.mrf.mxu0
        %v618 = vadd.f32 %v561, %v617
        %v619 = vpop.f32.mrf.mxu0
        %v620 = vadd.f32 %v561, %v619
        %621 = vdwg.mxu0
        %v622 = vmax.f32 %v614, 0.0
        %v623 = vmax.f32 %v616, 0.0
        %v624 = vmax.f32 %v618, 0.0
        %v625 = vmax.f32 %v620, 0.0
        %v626 = vsel %vm510, %v623, 0.0
        %v627 = vsel %vm510, %v625, 0.0
        %v632 = vrot.slane %v622, 6
        %v633 = vrot.slane %v626, 6
        %v634 = vrot.slane %v624, 6
        %v635 = vsel %vm572, %v632, %v634
        %v636 = vrot.slane %v627, 6
        %v637 = vsel %vm572, %v633, %v636
        %638 = vrot.lane.b32.xlu0 %v632, 127
        %v639 = vpop.permute.xlu0 %638
        %640 = vrot.lane.b32.xlu0 %v633, 127
        %v641 = vpop.permute.xlu0 %640
        %642 = vrot.lane.b32.xlu0 %v635, 127
        %v643 = vpop.permute.xlu0 %642
        %644 = vrot.lane.b32.xlu0 %v637, 127
        %v645 = vpop.permute.xlu0 %644
        %v646 = vsel %vm470, %v639, %v641
        %v647 = vsel %vm470, %v643, %v645
        %v652 = vrot.slane %v622, 4
        %v653 = vrot.slane %v626, 4
        %v654 = vrot.slane %v624, 4
        %v655 = vsel %vm538, %v652, %v654
        %v656 = vrot.slane %v627, 4
        %v657 = vsel %vm538, %v653, %v656
        %658 = vrot.lane.b32.xlu0 %v652, 126
        %v659 = vpop.permute.xlu0 %658
        %660 = vrot.lane.b32.xlu0 %v653, 126
        %v661 = vpop.permute.xlu0 %660
        %662 = vrot.lane.b32.xlu0 %v655, 126
        %v663 = vpop.permute.xlu0 %662
        %664 = vrot.lane.b32.xlu0 %v657, 126
        %v665 = vpop.permute.xlu0 %664
        %v666 = vsel %vm478, %v659, %v661
        %v667 = vsel %vm478, %v663, %v665
        %vm672 = vcmask 1045504
        %v673 = vrot.slane %v622, 2
        %v674 = vrot.slane %v626, 2
        %v675 = vrot.slane %v624, 2
        %v676 = vsel %vm672, %v673, %v675
        %v677 = vrot.slane %v627, 2
        %v678 = vsel %vm672, %v674, %v677
        %679 = vrot.lane.b32.xlu0 %v673, 112
        %v680 = vpop.permute.xlu0 %679
        %681 = vrot.lane.b32.xlu0 %v674, 112
        %v682 = vpop.permute.xlu0 %681
        %683 = vrot.lane.b32.xlu0 %v676, 112
        %v684 = vpop.permute.xlu0 %683
        %685 = vrot.lane.b32.xlu0 %v678, 112
        %v686 = vpop.permute.xlu0 %685
        %v687 = vsel %vm486, %v680, %v682
        %v688 = vsel %vm486, %v684, %v686
        %693 = vrot.lane.b32.xlu0 %v622, 111
        %v694 = vpop.permute.xlu0 %693
        %695 = vrot.lane.b32.xlu0 %v626, 111
        %v696 = vpop.permute.xlu0 %695
        %697 = vrot.lane.b32.xlu0 %v624, 111
        %v698 = vpop.permute.xlu0 %697
        %699 = vrot.lane.b32.xlu0 %v627, 111
        %v700 = vpop.permute.xlu0 %699
        %v701 = vsel %vm494, %v694, %v696
        %v702 = vsel %vm494, %v698, %v700
        %707 = vrot.lane.b32.xlu0 %v632, 110
        %v708 = vpop.permute.xlu0 %707
        %709 = vrot.lane.b32.xlu0 %v633, 110
        %v710 = vpop.permute.xlu0 %709
        %711 = vrot.lane.b32.xlu0 %v635, 110
        %v712 = vpop.permute.xlu0 %711
        %713 = vrot.lane.b32.xlu0 %v637, 110
        %v714 = vpop.permute.xlu0 %713
        %v715 = vsel %vm502, %v708, %v710
        %v716 = vsel %vm502, %v712, %v714
        %721 = vrot.lane.b32.xlu0 %v652, 96
        %v722 = vpop.permute.xlu0 %721
        %723 = vrot.lane.b32.xlu0 %v653, 96
        %v724 = vpop.permute.xlu0 %723
        %725 = vrot.lane.b32.xlu0 %v655, 96
        %v726 = vpop.permute.xlu0 %725
        %727 = vrot.lane.b32.xlu0 %v657, 96
        %v728 = vpop.permute.xlu0 %727
        %v729 = vsel %vm510, %v722, %v724
        %v730 = vsel %vm510, %v726, %v728
        %735 = vrot.lane.b32.xlu0 %v673, 95
        %v736 = vpop.permute.xlu0 %735
        %737 = vrot.lane.b32.xlu0 %v674, 95
        %v738 = vpop.permute.xlu0 %737
        %739 = vrot.lane.b32.xlu0 %v676, 95
        %v740 = vpop.permute.xlu0 %739
        %741 = vrot.lane.b32.xlu0 %v678, 95
        %v742 = vpop.permute.xlu0 %741
        %v743 = vsel %vm522, %v736, %v738
        %v744 = vsel %vm522, %v740, %v742
        %749 = vrot.lane.b32.xlu0 %v622, 94
        %v750 = vpop.permute.xlu0 %749
        %751 = vrot.lane.b32.xlu0 %v626, 94
        %v752 = vpop.permute.xlu0 %751
        %753 = vrot.lane.b32.xlu0 %v624, 94
        %v754 = vpop.permute.xlu0 %753
        %755 = vrot.lane.b32.xlu0 %v627, 94
        %v756 = vpop.permute.xlu0 %755
        %v757 = vsel %vm533, %v750, %v752
        %v758 = vsel %vm533, %v754, %v756
        %v763 = vsel %vm572, %v624, %v646
        %v764 = vsel %vm572, %v627, %v641
        %v765 = vsel %vm538, %v647, %v666
        %v766 = vsel %vm538, %v645, %v661
        %v767 = vsel %vm672, %v667, %v687
        %v768 = vsel %vm672, %v665, %v682
        %v769 = vsel %vm572, %v702, %v715
        %v770 = vsel %vm572, %v700, %v710
        %v771 = vsel %vm538, %v716, %v729
        %v772 = vsel %vm538, %v714, %v724
        %v773 = vsel %vm672, %v730, %v743
        %v774 = vsel %vm672, %v728, %v738
        %v775 = vpack.c.bf16 %v763, %v622
        %v776 = vpack.c.bf16 %v764, %v626
        %v777 = vpack.c.bf16 %v767, %v765
        %v778 = vpack.c.bf16 %v768, %v766
        %v779 = vpack.c.bf16 %v701, %v688
        %v780 = vpack.c.bf16 %v696, %v686
        %v781 = vpack.c.bf16 %v771, %v769
        %v782 = vpack.c.bf16 %v772, %v770
        %v783 = vpack.c.bf16 %v744, %v773
        %v784 = vpack.c.bf16 %v742, %v774
        %v785 = vpack.c.bf16 %v758, %v757
        %v786 = vpack.c.bf16 %v756, %v752
        %788 = vset.pattern.permute.xlu0 0
        %789 = vperm.xlu0 %788, %v365
        %v790 = vpop.permute.xlu0 %789
        %793 = vset.pattern.permute.xlu0 0
        %794 = vperm.xlu0 %793, %v366
        %v795 = vpop.permute.xlu0 %794
        %798 = vset.pattern.permute.xlu0 0
        %799 = vperm.xlu0 %798, %v367
        %v800 = vpop.permute.xlu0 %799
        %v805 = vunpack.c.l.b16 %v362
        %v806 = vunpack.c.l.b16 %v363
        %v807 = vunpack.c.l.b16 %v364
        %v808 = vpack.c.b16 %v806, %v805
        %v809 = vpack.c.b16 %v807, %v807
        %vm810 = vcmask 736256
        %v812 = vsel %vm810, %v808, 0
        %v815 = vsel %vm810, %v809, 0
        %vm817 = vcmask 1044480
        %v819 = vsel %vm817, %v785, 0
        %v822 = vsel %vm817, %v786, 0
        %824 = vmatprep.subr.bf16.mxu0 0
        %825 = vmatpush1.bf16.msra.mxu0 0
        %826 = vmatprep.subr.bf16.mxu0 0
        %827 = vmatpush1.bf16.msra.mxu0 0
        %828 = vmatprep.subr.bf16.mxu0 %v822
        %829 = vmatpush1.bf16.msra.mxu0 %v819
        %830 = vmatprep.subr.bf16.mxu0 %v784
        %831 = vmatpush1.bf16.msra.mxu0 %v783
        %832 = vmatprep.subr.bf16.mxu0 %v782
        %833 = vmatpush1.bf16.msra.mxu0 %v781
        %834 = vmatprep.subr.bf16.mxu0 %v780
        %835 = vmatpush1.bf16.msra.mxu0 %v779
        %836 = vmatprep.subr.bf16.mxu0 %v778
        %837 = vmatpush1.bf16.msra.mxu0 %v777
        %838 = vmatprep.subr.bf16.mxu0 %v776
        %839 = vmatpush1.bf16.msra.mxu0 %v775
        %840 = vmatprep.subr.bf16.mxu0 0
        %841 = vmatpush2.bf16.msra.mxu0 0
        %842 = vmatprep.subr.bf16.mxu0 0
        %843 = vmatpush2.bf16.msra.mxu0 0
        %844 = vmatprep.subr.bf16.mxu0 0
        %845 = vmatpush2.bf16.msra.mxu0 0
        %846 = vmatprep.subr.bf16.mxu0 0
        %847 = vmatpush2.bf16.msra.mxu0 0
        %848 = vmatprep.subr.bf16.mxu0 0
        %849 = vmatpush2.bf16.msra.mxu0 0
        %850 = vmatprep.subr.bf16.mxu0 0
        %851 = vmatpush2.bf16.msra.mxu0 0
        %852 = vmatprep.subr.bf16.mxu0 0
        %853 = vmatpush2.bf16.msra.mxu0 0
        %854 = vmatprep.subr.bf16.mxu0 0
        %855 = vmatpush2.bf16.msra.mxu0 0
        %856 = vmatprep.mubr.bf16.mxu0 0
        %857 = vmatmul.mubr.bf16.gmra.mxu0 %v812
        %v858 = vpop.f32.mrf.mxu0
        %v859 = vadd.f32 %v790, %v858
        %v860 = vpop.f32.mrf.mxu0
        %v861 = vadd.f32 %v790, %v860
        %v862 = vpop.f32.mrf.mxu0
        %v863 = vadd.f32 %v795, %v862
        %v864 = vpop.f32.mrf.mxu0
        %v865 = vadd.f32 %v795, %v864
        %866 = vmatprep.mubr.bf16.mxu0 0
        %867 = vmatmul.mubr.bf16.gmra.mxu0 %v815
        %v868 = vpop.f32.mrf.mxu0
        %v869 = vadd.f32 %v800, %v868
        %v870 = vpop.f32.mrf.mxu0
        %v871 = vadd.f32 %v800, %v870
        %v872 = vpop.f32.mrf.mxu0
        %v873 = vpop.f32.mrf.mxu0
        %874 = vdwg.mxu0
        %881 = vrot.lane.b32.xlu0 %v859, 112
        %v882 = vpop.permute.xlu0 %881
        %883 = vrot.lane.b32.xlu0 %v861, 112
        %v884 = vpop.permute.xlu0 %883
        %885 = vrot.lane.b32.xlu0 %v863, 112
        %v886 = vpop.permute.xlu0 %885
        %887 = vrot.lane.b32.xlu0 %v865, 112
        %v888 = vpop.permute.xlu0 %887
        %889 = vrot.lane.b32.xlu0 %v869, 112
        %v890 = vpop.permute.xlu0 %889
        %891 = vrot.lane.b32.xlu0 %v871, 112
        %v892 = vpop.permute.xlu0 %891
        %v893 = vsel %vm486, %v882, %v884
        %v894 = vsel %vm486, %v886, %v888
        %v895 = vsel %vm486, %v890, %v892
        %v902 = vmax.f32 %v859, %v893
        %v903 = vmax.f32 %v861, %v884
        %v904 = vmax.f32 %v863, %v894
        %v905 = vmax.f32 %v865, %v888
        %v906 = vmax.f32 %v869, %v895
        %v907 = vmax.f32 %v871, %v892
        %908 = vrot.lane.b32.xlu0 %v859, 96
        %v909 = vpop.permute.xlu0 %908
        %910 = vrot.lane.b32.xlu0 %v861, 96
        %v911 = vpop.permute.xlu0 %910
        %912 = vrot.lane.b32.xlu0 %v863, 96
        %v913 = vpop.permute.xlu0 %912
        %914 = vrot.lane.b32.xlu0 %v865, 96
        %v915 = vpop.permute.xlu0 %914
        %916 = vrot.lane.b32.xlu0 %v869, 96
        %v917 = vpop.permute.xlu0 %916
        %918 = vrot.lane.b32.xlu0 %v871, 96
        %v919 = vpop.permute.xlu0 %918
        %v920 = vsel %vm510, %v909, %v911
        %v921 = vsel %vm510, %v913, %v915
        %v922 = vsel %vm510, %v917, %v919
        %v929 = vmax.f32 %v902, %v920
        %v930 = vmax.f32 %v903, %v911
        %v931 = vmax.f32 %v904, %v921
        %v932 = vmax.f32 %v905, %v915
        %v933 = vmax.f32 %v906, %v922
        %v934 = vmax.f32 %v907, %v919
        %941 = vrot.lane.b32.xlu0 %v929, 127
        %v942 = vpop.permute.xlu0 %941
        %943 = vrot.lane.b32.xlu0 %v930, 127
        %v944 = vpop.permute.xlu0 %943
        %945 = vrot.lane.b32.xlu0 %v931, 127
        %v946 = vpop.permute.xlu0 %945
        %947 = vrot.lane.b32.xlu0 %v932, 127
        %v948 = vpop.permute.xlu0 %947
        %949 = vrot.lane.b32.xlu0 %v933, 127
        %v950 = vpop.permute.xlu0 %949
        %951 = vrot.lane.b32.xlu0 %v934, 127
        %v952 = vpop.permute.xlu0 %951
        %v953 = vsel %vm470, %v942, %v944
        %v954 = vsel %vm470, %v946, %v948
        %v955 = vsel %vm470, %v950, %v952
        %v962 = vmax.f32 %v929, %v953
        %v963 = vmax.f32 %v930, %v944
        %v964 = vmax.f32 %v931, %v954
        %v965 = vmax.f32 %v932, %v948
        %v966 = vmax.f32 %v933, %v955
        %v967 = vmax.f32 %v934, %v952
        %968 = vrot.lane.b32.xlu0 %v929, 126
        %v969 = vpop.permute.xlu0 %968
        %970 = vrot.lane.b32.xlu0 %v930, 126
        %v971 = vpop.permute.xlu0 %970
        %972 = vrot.lane.b32.xlu0 %v931, 126
        %v973 = vpop.permute.xlu0 %972
        %974 = vrot.lane.b32.xlu0 %v932, 126
        %v975 = vpop.permute.xlu0 %974
        %976 = vrot.lane.b32.xlu0 %v933, 126
        %v977 = vpop.permute.xlu0 %976
        %978 = vrot.lane.b32.xlu0 %v934, 126
        %v979 = vpop.permute.xlu0 %978
        %v980 = vsel %vm478, %v969, %v971
        %v981 = vsel %vm478, %v973, %v975
        %v982 = vsel %vm478, %v977, %v979
        %v989 = vmax.f32 %v962, %v980
        %v990 = vmax.f32 %v963, %v971
        %v991 = vmax.f32 %v964, %v981
        %v992 = vmax.f32 %v965, %v975
        %v993 = vmax.f32 %v966, %v982
        %v994 = vmax.f32 %v967, %v979
        %v995 = vmax.f32 %v989, 0.0
        %v996 = vmax.f32 %v990, 0.0
        %v997 = vmax.f32 %v991, 0.0
        %v998 = vmax.f32 %v992, 0.0
        %v999 = vmax.f32 %v993, 0.0
        %v1000 = vmax.f32 %v994, 0.0
        %v1001 = vpack.c.bf16 %v997, %v995
        %v1002 = vpack.c.bf16 %v998, %v996
        %v1003 = vpack.c.bf16 %v999, %v999
        %v1004 = vpack.c.bf16 %v1000, %v1000
        %v1025 = vunpack.c.l.b16 %v368
        %v1026 = vunpack.c.l.b16 %v369
        %v1027 = vunpack.c.l.b16 %v370
        %v1028 = vunpack.c.l.b16 %v371
        %v1029 = vunpack.c.l.b16 %v372
        %v1030 = vunpack.c.l.b16 %v373
        %v1031 = vunpack.c.l.b16 %v374
        %v1032 = vunpack.c.l.b16 %v375
        %v1033 = vunpack.c.l.b16 %v376
        %v1034 = vunpack.c.l.b16 %v377
        %v1035 = vunpack.c.l.b16 %v378
        %v1036 = vunpack.c.l.b16 %v379
        %v1037 = vunpack.c.l.b16 %v380
        %v1038 = vunpack.c.l.b16 %v381
        %v1039 = vunpack.c.l.b16 %v382
        %v1040 = vunpack.c.l.b16 %v383
        %v1041 = vunpack.c.l.b16 %v384
        %v1042 = vunpack.c.l.b16 %v385
        %v1043 = vunpack.c.l.b16 %v386
        %v1044 = vunpack.c.l.b16 %v387
        %v1045 = vpack.c.b16 %v1026, %v1025
        %v1046 = vpack.c.b16 %v1028, %v1027
        %v1047 = vpack.c.b16 %v1030, %v1029
        %v1048 = vpack.c.b16 %v1032, %v1031
        %v1049 = vpack.c.b16 %v1034, %v1033
        %v1050 = vpack.c.b16 %v1036, %v1035
        %v1051 = vpack.c.b16 %v1038, %v1037
        %v1052 = vpack.c.b16 %v1040, %v1039
        %v1053 = vpack.c.b16 %v1042, %v1041
        %v1054 = vpack.c.b16 %v1044, %v1043
        %vm1064 = vcmask 244736
        %v1066 = vsel %vm1064, %v1002, 0
        %v1069 = vsel %vm1064, %v1004, 0
        %vm1071 = vcmask 1046528
        %v1073 = vsel %vm1071, %v1054, 0
        %1075 = vmatprep.subr.bf16.mxu0 0
        %1076 = vmatpush1.bf16.msra.mxu0 %v1052
        %1077 = vmatprep.subr.bf16.mxu0 0
        %1078 = vmatpush1.bf16.msra.mxu0 %v1051
        %1079 = vmatprep.subr.bf16.mxu0 0
        %1080 = vmatpush1.bf16.msra.mxu0 %v1050
        %1081 = vmatprep.subr.bf16.mxu0 0
        %1082 = vmatpush1.bf16.msra.mxu0 %v1049
        %1083 = vmatprep.subr.bf16.mxu0 0
        %1084 = vmatpush1.bf16.msra.mxu0 %v1048
        %1085 = vmatprep.subr.bf16.mxu0 0
        %1086 = vmatpush1.bf16.msra.mxu0 %v1047
        %1087 = vmatprep.subr.bf16.mxu0 0
        %1088 = vmatpush1.bf16.msra.mxu0 %v1046
        %1089 = vmatprep.subr.bf16.mxu0 0
        %1090 = vmatpush1.bf16.msra.mxu0 %v1045
        %1091 = vmatprep.subr.bf16.mxu0 0
        %1092 = vmatpush2.bf16.msra.mxu0 0
        %1093 = vmatprep.subr.bf16.mxu0 0
        %1094 = vmatpush2.bf16.msra.mxu0 0
        %1095 = vmatprep.subr.bf16.mxu0 0
        %1096 = vmatpush2.bf16.msra.mxu0 0
        %1097 = vmatprep.subr.bf16.mxu0 0
        %1098 = vmatpush2.bf16.msra.mxu0 0
        %1099 = vmatprep.subr.bf16.mxu0 0
        %1100 = vmatpush2.bf16.msra.mxu0 0
        %1101 = vmatprep.subr.bf16.mxu0 0
        %1102 = vmatpush2.bf16.msra.mxu0 0
        %1103 = vmatprep.subr.bf16.mxu0 0
        %1104 = vmatpush2.bf16.msra.mxu0 %v1073
        %1105 = vmatprep.subr.bf16.mxu0 0
        %1106 = vmatpush2.bf16.msra.mxu0 %v1053
        %1107 = vmatprep.mubr.bf16.mxu0 %v1066
        %1108 = vmatmul.mubr.bf16.gmra.mxu0 %v1001
        %v1109 = vpop.f32.mrf.mxu0
        %v1110 = vadd.f32 0.0, %v1109
        %v1111 = vpop.f32.mrf.mxu0
        %v1112 = vpop.f32.mrf.mxu0
        %v1113 = vadd.f32 0.0, %v1112
        %v1114 = vpop.f32.mrf.mxu0
        %1115 = vmatprep.mubr.bf16.mxu0 %v1069
        %1116 = vmatmul.mubr.bf16.gmra.mxu0 %v1003
        %v1117 = vpop.f32.mrf.mxu0
        %v1118 = vadd.f32 0.0, %v1117
        %v1119 = vpop.f32.mrf.mxu0
        %v1120 = vpop.f32.mrf.mxu0
        %v1121 = vpop.f32.mrf.mxu0
        %1122 = vdwg.mxu0
        %v1124 = vrot.slane %v1110, 1
        %1125 = vrot.lane.b32.xlu0 %v1124, 25
        %v1126 = vpop.permute.xlu0 %1125
        %v1128 = vrot.slane %v1110, 2
        %1129 = vrot.lane.b32.xlu0 %v1128, 50
        %v1130 = vpop.permute.xlu0 %1129
        %v1132 = vrot.slane %v1110, 3
        %1133 = vrot.lane.b32.xlu0 %v1132, 75
        %v1134 = vpop.permute.xlu0 %1133
        %v1136 = vrot.slane %v1110, 4
        %1137 = vrot.lane.b32.xlu0 %v1136, 100
        %v1138 = vpop.permute.xlu0 %1137
        %v1140 = vrot.slane %v1110, 5
        %1141 = vrot.lane.b32.xlu0 %v1140, 125
        %v1142 = vpop.permute.xlu0 %1141
        %v1144 = vrot.slane %v1110, 6
        %1145 = vrot.lane.b32.xlu0 %v1144, 22
        %v1146 = vpop.permute.xlu0 %1145
        %v1148 = vrot.slane %v1110, 7
        %1149 = vrot.lane.b32.xlu0 %v1148, 47
        %v1150 = vpop.permute.xlu0 %1149
        %1153 = vrot.lane.b32.xlu0 %v1113, 72
        %v1154 = vpop.permute.xlu0 %1153
        %v1156 = vrot.slane %v1113, 1
        %1157 = vrot.lane.b32.xlu0 %v1156, 97
        %v1158 = vpop.permute.xlu0 %1157
        %v1160 = vrot.slane %v1113, 2
        %1161 = vrot.lane.b32.xlu0 %v1160, 122
        %v1162 = vpop.permute.xlu0 %1161
        %v1164 = vrot.slane %v1113, 3
        %1165 = vrot.lane.b32.xlu0 %v1164, 19
        %v1166 = vpop.permute.xlu0 %1165
        %v1168 = vrot.slane %v1113, 4
        %1169 = vrot.lane.b32.xlu0 %v1168, 44
        %v1170 = vpop.permute.xlu0 %1169
        %v1172 = vrot.slane %v1113, 5
        %1173 = vrot.lane.b32.xlu0 %v1172, 69
        %v1174 = vpop.permute.xlu0 %1173
        %v1176 = vrot.slane %v1113, 6
        %1177 = vrot.lane.b32.xlu0 %v1176, 94
        %v1178 = vpop.permute.xlu0 %1177
        %v1180 = vrot.slane %v1113, 7
        %1181 = vrot.lane.b32.xlu0 %v1180, 119
        %v1182 = vpop.permute.xlu0 %1181
        %vm1184 = vcmask 203776
        %v1185 = vsel %vm1184, %v1110, %v1126
        %vm1186 = vcmask 408576
        %v1187 = vsel %vm1186, %v1185, %v1130
        %vm1188 = vcmask 613376
        %v1189 = vsel %vm1188, %v1187, %v1134
        %vm1190 = vcmask 818176
        %v1191 = vsel %vm1190, %v1189, %v1138
        %vm1192 = vcmask 1022976
        %v1193 = vsel %vm1192, %v1191, %v1142
        %vm1194 = vcmask 179200
        %v1195 = vsel %vm1194, %v1142, %v1146
        %vm1196 = vcmask 384000
        %v1197 = vsel %vm1196, %v1195, %v1150
        %vm1198 = vcmask 588800
        %v1199 = vsel %vm1198, %v1197, %v1154
        %vm1200 = vcmask 793600
        %v1201 = vsel %vm1200, %v1199, %v1158
        %vm1202 = vcmask 998400
        %v1203 = vsel %vm1202, %v1201, %v1162
        %vm1204 = vcmask 154624
        %v1205 = vsel %vm1204, %v1162, %v1166
        %vm1206 = vcmask 359424
        %v1207 = vsel %vm1206, %v1205, %v1170
        %vm1208 = vcmask 564224
        %v1209 = vsel %vm1208, %v1207, %v1174
        %v1210 = vsel %vm533, %v1209, %v1178
        %vm1211 = vcmask 973824
        %v1212 = vsel %vm1211, %v1210, %v1182
        %v1214 = vrot.slane %v1118, 1
        %1215 = vrot.lane.b32.xlu0 %v1214, 25
        %v1216 = vpop.permute.xlu0 %1215
        %v1218 = vrot.slane %v1118, 2
        %1219 = vrot.lane.b32.xlu0 %v1218, 50
        %v1220 = vpop.permute.xlu0 %1219
        %v1222 = vrot.slane %v1118, 3
        %1223 = vrot.lane.b32.xlu0 %v1222, 75
        %v1224 = vpop.permute.xlu0 %1223
        %v1226 = vsel %vm1184, %v1118, %v1216
        %v1227 = vsel %vm1186, %v1226, %v1220
        %v1228 = vsel %vm1188, %v1227, %v1224
        %1230 = vrot.lane.b32.xlu0 %v1228, 16
        %v1231 = vpop.permute.xlu0 %1230
        %vm1233 = vcmask 130048
        %v1234 = vsel %vm1233, %v1182, %v1231
        %v1235 = vpack.c.bf16 %v1193, %v1193
        %v1236 = vpack.c.bf16 %v1203, %v1203
        %v1237 = vpack.c.bf16 %v1212, %v1212
        %v1238 = vpack.c.bf16 %v1234, %v1234
        %v1302 = vunpack.c.l.b16 %v388
        %v1303 = vunpack.c.l.b16 %v389
        %v1304 = vunpack.c.l.b16 %v390
        %v1305 = vunpack.c.l.b16 %v391
        %v1306 = vunpack.c.l.b16 %v392
        %v1307 = vunpack.c.l.b16 %v393
        %v1308 = vunpack.c.l.b16 %v394
        %v1309 = vunpack.c.l.b16 %v395
        %v1310 = vunpack.c.l.b16 %v396
        %v1311 = vunpack.c.l.b16 %v397
        %v1312 = vunpack.c.l.b16 %v398
        %v1313 = vunpack.c.l.b16 %v399
        %v1314 = vunpack.c.l.b16 %v400
        %v1315 = vunpack.c.l.b16 %v401
        %v1316 = vunpack.c.l.b16 %v402
        %v1317 = vunpack.c.l.b16 %v403
        %v1318 = vunpack.c.l.b16 %v404
        %v1319 = vunpack.c.l.b16 %v405
        %v1320 = vunpack.c.l.b16 %v406
        %v1321 = vunpack.c.l.b16 %v407
        %v1322 = vunpack.c.l.b16 %v408
        %v1323 = vunpack.c.l.b16 %v409
        %v1324 = vunpack.c.l.b16 %v410
        %v1325 = vunpack.c.l.b16 %v411
        %v1326 = vunpack.c.l.b16 %v412
        %v1327 = vunpack.c.l.b16 %v413
        %v1328 = vunpack.c.l.b16 %v414
        %v1329 = vunpack.c.l.b16 %v415
        %v1330 = vunpack.c.l.b16 %v416
        %v1331 = vunpack.c.l.b16 %v417
        %v1332 = vunpack.c.l.b16 %v418
        %v1333 = vunpack.c.l.b16 %v419
        %v1334 = vunpack.c.l.b16 %v420
        %v1335 = vunpack.c.l.b16 %v421
        %v1336 = vunpack.c.l.b16 %v422
        %v1337 = vunpack.c.l.b16 %v423
        %v1338 = vunpack.c.l.b16 %v424
        %v1339 = vunpack.c.l.b16 %v425
        %v1340 = vunpack.c.l.b16 %v426
        %v1341 = vunpack.c.l.b16 %v427
        %v1342 = vunpack.c.l.b16 %v428
        %v1343 = vunpack.c.l.b16 %v429
        %v1344 = vunpack.c.l.b16 %v430
        %v1345 = vunpack.c.l.b16 %v431
        %v1346 = vunpack.c.l.b16 %v432
        %v1347 = vunpack.c.l.b16 %v433
        %v1348 = vunpack.c.l.b16 %v434
        %v1349 = vunpack.c.l.b16 %v435
        %v1350 = vunpack.c.l.b16 %v436
        %v1351 = vunpack.c.l.b16 %v437
        %v1352 = vunpack.c.l.b16 %v438
        %v1353 = vunpack.c.l.b16 %v439
        %v1354 = vunpack.c.l.b16 %v440
        %v1355 = vunpack.c.l.b16 %v441
        %v1356 = vunpack.c.l.b16 %v442
        %v1357 = vunpack.c.l.b16 %v443
        %v1358 = vunpack.c.l.b16 %v444
        %v1359 = vunpack.c.l.b16 %v445
        %v1360 = vunpack.c.l.b16 %v446
        %v1361 = vunpack.c.l.b16 %v447
        %v1362 = vunpack.c.l.b16 %v448
        %v1363 = vunpack.c.l.b16 %v449
        %v1364 = vunpack.c.l.b16 %v450
        %v1365 = vpack.c.b16 %v1303, %v1302
        %v1366 = vpack.c.b16 %v1305, %v1304
        %v1367 = vpack.c.b16 %v1307, %v1306
        %v1368 = vpack.c.b16 %v1309, %v1308
        %v1369 = vpack.c.b16 %v1311, %v1310
        %v1370 = vpack.c.b16 %v1313, %v1312
        %v1371 = vpack.c.b16 %v1315, %v1314
        %v1372 = vpack.c.b16 %v1317, %v1316
        %v1373 = vpack.c.b16 %v1319, %v1318
        %v1374 = vpack.c.b16 %v1321, %v1320
        %v1375 = vpack.c.b16 %v1323, %v1322
        %v1376 = vpack.c.b16 %v1325, %v1324
        %v1377 = vpack.c.b16 %v1327, %v1326
        %v1378 = vpack.c.b16 %v1329, %v1328
        %v1379 = vpack.c.b16 %v1331, %v1330
        %v1380 = vpack.c.b16 %v1333, %v1332
        %v1381 = vpack.c.b16 %v1335, %v1334
        %v1382 = vpack.c.b16 %v1337, %v1336
        %v1383 = vpack.c.b16 %v1339, %v1338
        %v1384 = vpack.c.b16 %v1341, %v1340
        %v1385 = vpack.c.b16 %v1343, %v1342
        %v1386 = vpack.c.b16 %v1345, %v1344
        %v1387 = vpack.c.b16 %v1347, %v1346
        %v1388 = vpack.c.b16 %v1349, %v1348
        %v1389 = vpack.c.b16 %v1351, %v1350
        %v1390 = vpack.c.b16 %v1353, %v1352
        %v1391 = vpack.c.b16 %v1355, %v1354
        %v1392 = vpack.c.b16 %v1357, %v1356
        %v1393 = vpack.c.b16 %v1359, %v1358
        %v1394 = vpack.c.b16 %v1361, %v1360
        %v1395 = vpack.c.b16 %v1363, %v1362
        %v1396 = vpack.c.b16 %v1364, %v1364
        %vm1428 = vcmask 949248
        %v1430 = vsel %vm1428, %v1238, 0
        %v1433 = vsel %vm572, %v1396, 0
        %1435 = vmatprep.subr.bf16.mxu0 0
        %1436 = vmatpush1.bf16.msra.mxu0 %v1372
        %1437 = vmatprep.subr.bf16.mxu0 0
        %1438 = vmatpush1.bf16.msra.mxu0 %v1371
        %1439 = vmatprep.subr.bf16.mxu0 0
        %1440 = vmatpush1.bf16.msra.mxu0 %v1370
        %1441 = vmatprep.subr.bf16.mxu0 0
        %1442 = vmatpush1.bf16.msra.mxu0 %v1369
        %1443 = vmatprep.subr.bf16.mxu0 0
        %1444 = vmatpush1.bf16.msra.mxu0 %v1368
        %1445 = vmatprep.subr.bf16.mxu0 0
        %1446 = vmatpush1.bf16.msra.mxu0 %v1367
        %1447 = vmatprep.subr.bf16.mxu0 0
        %1448 = vmatpush1.bf16.msra.mxu0 %v1366
        %1449 = vmatprep.subr.bf16.mxu0 0
        %1450 = vmatpush1.bf16.msra.mxu0 %v1365
        %1451 = vmatprep.subr.bf16.mxu0 0
        %1452 = vmatpush2.bf16.msra.mxu0 %v1380
        %1453 = vmatprep.subr.bf16.mxu0 0
        %1454 = vmatpush2.bf16.msra.mxu0 %v1379
        %1455 = vmatprep.subr.bf16.mxu0 0
        %1456 = vmatpush2.bf16.msra.mxu0 %v1378
        %1457 = vmatprep.subr.bf16.mxu0 0
        %1458 = vmatpush2.bf16.msra.mxu0 %v1377
        %1459 = vmatprep.subr.bf16.mxu0 0
        %1460 = vmatpush2.bf16.msra.mxu0 %v1376
        %1461 = vmatprep.subr.bf16.mxu0 0
        %1462 = vmatpush2.bf16.msra.mxu0 %v1375
        %1463 = vmatprep.subr.bf16.mxu0 0
        %1464 = vmatpush2.bf16.msra.mxu0 %v1374
        %1465 = vmatprep.subr.bf16.mxu0 0
        %1466 = vmatpush2.bf16.msra.mxu0 %v1373
        %1467 = vmatprep.mubr.bf16.mxu0 %v1236
        %1468 = vmatmul.mubr.bf16.gmra.mxu0 %v1235
        %v1469 = vpop.f32.mrf.mxu0
        %v1470 = vadd.f32 %v451, %v1469
        %v1471 = vpop.f32.mrf.mxu0
        %v1472 = vpop.f32.mrf.mxu0
        %v1473 = vpop.f32.mrf.mxu0
        %1474 = vdwg.mxu0
        %1475 = vmatprep.subr.bf16.mxu0 0
        %1476 = vmatpush1.bf16.msra.mxu0 %v1388
        %1477 = vmatprep.subr.bf16.mxu0 0
        %1478 = vmatpush1.bf16.msra.mxu0 %v1387
        %1479 = vmatprep.subr.bf16.mxu0 0
        %1480 = vmatpush1.bf16.msra.mxu0 %v1386
        %1481 = vmatprep.subr.bf16.mxu0 0
        %1482 = vmatpush1.bf16.msra.mxu0 %v1385
        %1483 = vmatprep.subr.bf16.mxu0 0
        %1484 = vmatpush1.bf16.msra.mxu0 %v1384
        %1485 = vmatprep.subr.bf16.mxu0 0
        %1486 = vmatpush1.bf16.msra.mxu0 %v1383
        %1487 = vmatprep.subr.bf16.mxu0 0
        %1488 = vmatpush1.bf16.msra.mxu0 %v1382
        %1489 = vmatprep.subr.bf16.mxu0 0
        %1490 = vmatpush1.bf16.msra.mxu0 %v1381
        %1491 = vmatprep.subr.bf16.mxu0 0
        %1492 = vmatpush2.bf16.msra.mxu0 %v1433
        %1493 = vmatprep.subr.bf16.mxu0 0
        %1494 = vmatpush2.bf16.msra.mxu0 %v1395
        %1495 = vmatprep.subr.bf16.mxu0 0
        %1496 = vmatpush2.bf16.msra.mxu0 %v1394
        %1497 = vmatprep.subr.bf16.mxu0 0
        %1498 = vmatpush2.bf16.msra.mxu0 %v1393
        %1499 = vmatprep.subr.bf16.mxu0 0
        %1500 = vmatpush2.bf16.msra.mxu0 %v1392
        %1501 = vmatprep.subr.bf16.mxu0 0
        %1502 = vmatpush2.bf16.msra.mxu0 %v1391
        %1503 = vmatprep.subr.bf16.mxu0 0
        %1504 = vmatpush2.bf16.msra.mxu0 %v1390
        %1505 = vmatprep.subr.bf16.mxu0 0
        %1506 = vmatpush2.bf16.msra.mxu0 %v1389
        %1507 = vmatprep.mubr.bf16.mxu0 %v1430
        %1508 = vmatmul.mubr.bf16.gmra.mxu0 %v1237
        %v1509 = vpop.f32.mrf.mxu0
        %v1510 = vadd.f32 %v1470, %v1509
        %v1511 = vpop.f32.mrf.mxu0
        %v1512 = vpop.f32.mrf.mxu0
        %v1513 = vpop.f32.mrf.mxu0
        %1514 = vdwg.mxu0
        %v1515 = vmax.f32 %v1510, 0.0
        %v1516 = vpack.c.bf16 %v1515, %v1515
        %v1524 = vunpack.c.l.b16 %v452
        %v1525 = vunpack.c.l.b16 %v453
        %v1526 = vunpack.c.l.b16 %v454
        %v1527 = vunpack.c.l.b16 %v455
        %v1528 = vunpack.c.l.b16 %v456
        %v1529 = vunpack.c.l.b16 %v457
        %v1530 = vunpack.c.l.b16 %v458
        %v1531 = vpack.c.b16 %v1525, %v1524
        %v1532 = vpack.c.b16 %v1527, %v1526
        %v1533 = vpack.c.b16 %v1529, %v1528
        %v1534 = vpack.c.b16 %v1530, %v1530
        %v1539 = vsel %vm1186, %v1516, 0
        %vm1541 = vcmask 1040384
        %v1543 = vsel %vm1541, %v1534, 0
        %1545 = vmatprep.subr.bf16.mxu0 0
        %1546 = vmatpush1.bf16.msra.mxu0 0
        %1547 = vmatprep.subr.bf16.mxu0 0
        %1548 = vmatpush1.bf16.msra.mxu0 0
        %1549 = vmatprep.subr.bf16.mxu0 0
        %1550 = vmatpush1.bf16.msra.mxu0 0
        %1551 = vmatprep.subr.bf16.mxu0 0
        %1552 = vmatpush1.bf16.msra.mxu0 0
        %1553 = vmatprep.subr.bf16.mxu0 0
        %1554 = vmatpush1.bf16.msra.mxu0 %v1543
        %1555 = vmatprep.subr.bf16.mxu0 0
        %1556 = vmatpush1.bf16.msra.mxu0 %v1533
        %1557 = vmatprep.subr.bf16.mxu0 0
        %1558 = vmatpush1.bf16.msra.mxu0 %v1532
        %1559 = vmatprep.subr.bf16.mxu0 0
        %1560 = vmatpush1.bf16.msra.mxu0 %v1531
        %1561 = vmatprep.subr.bf16.mxu0 0
        %1562 = vmatpush2.bf16.msra.mxu0 0
        %1563 = vmatprep.subr.bf16.mxu0 0
        %1564 = vmatpush2.bf16.msra.mxu0 0
        %1565 = vmatprep.subr.bf16.mxu0 0
        %1566 = vmatpush2.bf16.msra.mxu0 0
        %1567 = vmatprep.subr.bf16.mxu0 0
        %1568 = vmatpush2.bf16.msra.mxu0 0
        %1569 = vmatprep.subr.bf16.mxu0 0
        %1570 = vmatpush2.bf16.msra.mxu0 0
        %1571 = vmatprep.subr.bf16.mxu0 0
        %1572 = vmatpush2.bf16.msra.mxu0 0
        %1573 = vmatprep.subr.bf16.mxu0 0
        %1574 = vmatpush2.bf16.msra.mxu0 0
        %1575 = vmatprep.subr.bf16.mxu0 0
        %1576 = vmatpush2.bf16.msra.mxu0 0
        %1577 = vmatprep.mubr.bf16.mxu0 0
        %1578 = vmatmul.mubr.bf16.gmra.mxu0 %v1539
        %v1579 = vpop.f32.mrf.mxu0
        %v1580 = vadd.f32 %v459, %v1579
        %v1581 = vpop.f32.mrf.mxu0
        %v1582 = vpop.f32.mrf.mxu0
        %v1583 = vpop.f32.mrf.mxu0
        %1584 = vdwg.mxu0
        %vm1585 = vcmask 73728
        %1586 = vst.msk [vmem:[%s351] sm:$0x1] %vm1585, %v1580
        %s1587 = sand.u32 %s247, 1
        %s1588 = scalar_lea.sflag [#allocation3], %s1587
        %s1589 = sand.u32 %s247, 1
        %s1590 = scalar_lea.vmem [#allocation2], %s1589
        // Predicated region
        $region61: #{naive_cnn_forward.1} parent=59 // pred_check
          %p1591 = pneg %p257
        $region62: #{naive_cnn_forward.1} parent=59 // pred_check_branch
          %1593 = sbr.rel (%p1591) target = $region64
        $region63: #{naive_cnn_forward.1} parent=59 // pred_region
          %s1595 = ssub.s32 16, 16
          %1596 = vsyncadd %s1588, %s1595
          %s1597 = smul.addr %s24, 16
          %s1598 = scalar_lea.hbm %s10, %s1597
          %s1600 = sshll.u32 %s1590, 4
          %s1601 = int_to_ptr.vmem [resolvable:$true] %s1600
          %1603 = dma.vmem_to_hbm [thread:$0]  %s1601, 16, %s1598, %s1588
        $region64: #{naive_cnn_forward.1} parent=59 // pred_fallthru
          _
      $region60: #{naive_cnn_forward.1} parent=5 // pred_fallthru
        _
      %p1604 = scmp.le.s32.totalorder 2, %s19
      // Predicated region
      $region65: #{naive_cnn_forward.1} parent=5 // pred_check
        %p1605 = pneg %p1604
      $region66: #{naive_cnn_forward.1} parent=5 // pred_check_branch
        %1607 = sbr.rel (%p1605) target = $region68
      $region67: #{naive_cnn_forward.1} parent=5 // pred_region
        %s1608 = ssub.s32 %s19, 2
        // Predicated region
        $region69: #{naive_cnn_forward.1} parent=67 // pred_check
          %p1609 = pneg %p263
        $region70: #{naive_cnn_forward.1} parent=67 // pred_check_branch
          %1611 = sbr.rel (%p1609) target = $region72
        $region71: #{naive_cnn_forward.1} parent=67 // pred_region
          %s1612 = sand.u32 %s248, 1
          %s1613 = scalar_lea.sflag [#allocation3], %s1612
          %s1614 = sand.u32 %s248, 1
          %s1615 = scalar_lea.vmem [#allocation2], %s1614
          %1616 = dma.done %s1613, 16
        $region72: #{naive_cnn_forward.1} parent=67 // pred_fallthru
          _
      $region68: #{naive_cnn_forward.1} parent=5 // pred_fallthru
        _
    $region6: #{naive_cnn_forward.1} parent=1 // loop_footer
      %s23 = sadd.s32 1, %s19
    $region7: #{naive_cnn_forward.1} parent=1 // loop_footer_branch
      %18 = sbr.rel target = $region3
    $region8: #{naive_cnn_forward.1} parent=1 // loop_exit
      _
    %1617 = vsyncpa [#allocation3], 1
    %s1618 = scalar_lea.sflag [#allocation3], 1
    %1619 = vsyncpa %s1618, 1

</llo_original>
